<compile_context>
chip_gen: v7x
topology: tpu7x:2x2x1
jax: 0.10.0
libtpu: 0.0.40
codegen_flags: <defaults>
</compile_context>

<pallas_src>
import jax
import jax.numpy as jnp
from jax import lax
from jax.experimental import pallas as pl
from jax.experimental.pallas import tpu as pltpu

SELU_ALPHA = 1.6732632423543772
SELU_SCALE = 1.0507009873554805
L2_EPS = 1e-12  # torch.nn.functional.normalize default eps

LANE = 128     # vreg lane width (feature axis)
SUBLANE = 8    # vreg sublane count (batch axis)


def _round_up(n, m):
    return ((n + m - 1) // m) * m


def _chip_flags():
    """(is_v5, is_v7) from the attached TPU's device_kind."""
    kind = ""
    try:
        kind = jax.devices()[0].device_kind.lower()
    except Exception:
        pass
    return ("v5" in kind), ("v7" in kind)


def _feat_pad(dim, is_v5):
    # 256-lane alignment feeds the 256x256 MXU on v6e/v7x, but only when it is
    # cheap (dim already wider than one 128-lane vreg).  v5e's MXU is 128x128.
    if (not is_v5) and dim > LANE:
        return _round_up(dim, 256)
    return _round_up(dim, LANE)


def _selu_core_f32(v):
    # Unscaled SELU (the 1.0507 output scale is folded into the next layer's
    # weights in prepare_params).  min(v, 0) keeps exp() finite for large v.
    return jnp.where(v > 0, v, SELU_ALPHA * (jnp.exp(jnp.minimum(v, 0.0)) - 1.0))


def mlp_kernel(x_ref, w1_ref, b1_ref, w2_ref, b2_ref, w3_ref, b3_ref,
               w4_ref, b4_ref, o_ref):
    cdt = w1_ref.dtype  # MXU input dtype; accumulation is f32 everywhere

    x = x_ref[...]
    h = jnp.dot(x, w1_ref[...], preferred_element_type=jnp.float32)
    h = _selu_core_f32(h + b1_ref[...].astype(jnp.float32))

    h = jnp.dot(h.astype(cdt), w2_ref[...], preferred_element_type=jnp.float32)
    h = _selu_core_f32(h + b2_ref[...].astype(jnp.float32))

    h = jnp.dot(h.astype(cdt), w3_ref[...], preferred_element_type=jnp.float32)
    h = _selu_core_f32(h + b3_ref[...].astype(jnp.float32))

    y = jnp.dot(h.astype(cdt), w4_ref[...], preferred_element_type=jnp.float32)
    y = y + b4_ref[...].astype(jnp.float32)

    # L2-normalize along the feature axis.  Padded lanes of y are exactly 0
    # (zero-padded weights/biases -> SELU(0)=0 through every layer), so the
    # reduction over the padded width equals the reduction over out_dim.
    # rsqrt uses the EUP slot; the tile-wide op is a multiply, not a divide.
    sumsq = jnp.sum(y * y, axis=1, keepdims=True)
    inv = lax.rsqrt(jnp.maximum(sumsq, jnp.float32(L2_EPS * L2_EPS)))
    o_ref[...] = (y * inv).astype(o_ref.dtype)


def prepare_params(params, *, compute_dtype=jnp.bfloat16):
    """One-time padding / casting / scale-folding of the Linear parameters.

    params: (w1,b1,...,w4,b4), w as [in,out] and b as [1,out], f32.
    Returns padded params with weights in `compute_dtype`, biases in f32.
    """
    (w1, b1, w2, b2, w3, b3, w4, b4) = params
    is_v5, _ = _chip_flags()
    input_dim, hidden_dim = w1.shape
    output_dim = w4.shape[1]
    din_p = _feat_pad(input_dim, is_v5)
    h_p = _feat_pad(hidden_dim, is_v5)
    dout_p = _feat_pad(output_dim, is_v5)

    def pad2(a, rows, cols):
        return jnp.pad(a, ((0, rows - a.shape[0]), (0, cols - a.shape[1])))

    # Fold the SELU output scale of layers 1-3 into W2 / W3 / W4:
    #   (scale*h) @ W + b  ==  h @ (scale*W) + b
    w1p = pad2(w1, din_p, h_p).astype(compute_dtype)
    w2p = pad2(w2 * SELU_SCALE, h_p, h_p).astype(compute_dtype)
    w3p = pad2(w3 * SELU_SCALE, h_p, h_p).astype(compute_dtype)
    w4p = pad2(w4 * SELU_SCALE, h_p, dout_p).astype(compute_dtype)
    b1p = pad2(b1.astype(jnp.float32), 1, h_p)
    b2p = pad2(b2.astype(jnp.float32), 1, h_p)
    b3p = pad2(b3.astype(jnp.float32), 1, h_p)
    b4p = pad2(b4.astype(jnp.float32), 1, dout_p)
    return (w1p, b1p, w2p, b2p, w3p, b3p, w4p, b4p)


def costom_mlp_forward(x, prepared, *, output_dim=None, tile_b=None,
                       single_buffer_weights=True):
    """x: [batch, input_dim] f32.  prepared: output of prepare_params()."""
    (w1p, b1p, w2p, b2p, w3p, b3p, w4p, b4p) = prepared
    batch, input_dim = x.shape
    din_p, h_p = w1p.shape
    dout_p = w4p.shape[1]
    if output_dim is None:
        output_dim = dout_p
    assert input_dim <= din_p
    compute_dtype = w1p.dtype
    c_item = jnp.dtype(compute_dtype).itemsize
    o_item = jnp.dtype(x.dtype).itemsize

    is_v5, is_v7 = _chip_flags()

    # Batch tile: match MXU geometry (256 on v6e/v7x, 128 on v5e), clamp to
    # the (sublane-rounded) batch.
    if tile_b is None:
        tile_b = 128 if is_v5 else 256
    tile_b = max(SUBLANE, min(tile_b, _round_up(batch, SUBLANE)))
    tile_b = _round_up(tile_b, SUBLANE)
    batch_p = _round_up(batch, tile_b)
    if is_v7:
        # Keep >=2 grid steps so the "parallel" axis shards across both TCs.
        while batch_p // tile_b < 2 and tile_b > SUBLANE:
            tile_b = _round_up(max(SUBLANE, tile_b // 2), SUBLANE)
            batch_p = _round_up(batch, tile_b)
    grid = (batch_p // tile_b,)

    xp = jnp.pad(x, ((0, batch_p - batch), (0, din_p - input_dim))
                 ).astype(compute_dtype)

    # Weights/biases: block == full array, constant index_map -> VMEM-resident
    # across all grid iterations (DMA'd once).  Single-buffer them to halve
    # their VMEM footprint (they never change block index).
    def const_spec(a):
        if single_buffer_weights:
            return pl.BlockSpec(a.shape, lambda i: (0,) * a.ndim,
                                pipeline_mode=pl.Buffered(1))
        return pl.BlockSpec(a.shape, lambda i: (0,) * a.ndim)

    consts = (w1p, b1p, w2p, b2p, w3p, b3p, w4p, b4p)
    const_bytes = sum(int(a.size) * a.dtype.itemsize for a in consts)
    wbuf = 1 if single_buffer_weights else 2

    # Explicit scoped-VMEM request: resident constants + double-buffered x/o
    # tiles + f32 intermediates, ~25% headroom, capped per generation.
    io_bytes = 2 * tile_b * (din_p * c_item + dout_p * o_item)
    scratch_bytes = 6 * tile_b * max(h_p, dout_p) * 4
    needed = int(1.25 * (wbuf * const_bytes + io_bytes + scratch_bytes)) + (2 << 20)
    cap = (56 << 20) if is_v7 else (100 << 20)
    vmem_limit = int(min(max(needed, 32 << 20), cap))

    flops = 2 * batch_p * (din_p * h_p + 2 * h_p * h_p + h_p * dout_p)
    transcendentals = 3 * batch_p * h_p + batch_p  # SELU exps + per-row rsqrt
    bytes_accessed = (int(xp.size) * c_item + const_bytes
                      + batch_p * dout_p * o_item)

    out = pl.pallas_call(
        mlp_kernel,
        out_shape=jax.ShapeDtypeStruct((batch_p, dout_p), x.dtype),
        grid=grid,
        in_specs=[pl.BlockSpec((tile_b, din_p), lambda i: (i, 0)),
                  const_spec(w1p), const_spec(b1p),
                  const_spec(w2p), const_spec(b2p),
                  const_spec(w3p), const_spec(b3p),
                  const_spec(w4p), const_spec(b4p)],
        out_specs=pl.BlockSpec((tile_b, dout_p), lambda i: (i, 0)),
        compiler_params=pltpu.CompilerParams(
            dimension_semantics=("parallel",),
            vmem_limit_bytes=vmem_limit),
        cost_estimate=pl.CostEstimate(
            flops=flops,
            transcendentals=transcendentals,
            bytes_accessed=bytes_accessed),
    )(xp, *consts)

    # Slice away batch / lane padding.
    return out[:batch, :output_dim]


def init_params(key, input_dim, hidden_dim, output_dim):
    """PyTorch-Linear-style init (uniform +/- 1/sqrt(fan_in)).
    Weights stored as [in, out]; biases as [1, out]."""
    dims = [(input_dim, hidden_dim),
            (hidden_dim, hidden_dim),
            (hidden_dim, hidden_dim),
            (hidden_dim, output_dim)]
    params = []
    for (fan_in, fan_out) in dims:
        key, kw, kb = jax.random.split(key, 3)
        bound = 1.0 / (fan_in ** 0.5)
        w = jax.random.uniform(kw, (fan_in, fan_out), jnp.float32, -bound, bound)
        b = jax.random.uniform(kb, (1, fan_out), jnp.float32, -bound, bound)
        params += [w, b]
    return tuple(params)


if __name__ == "__main__":
    key = jax.random.PRNGKey(0)
    batch, input_dim, hidden_dim, output_dim = 4, 16, 32, 16

    kx, kp = jax.random.split(key)
    x = jax.random.normal(kx, (batch, input_dim), dtype=jnp.float32)
    params = init_params(kp, input_dim, hidden_dim, output_dim)

    # Plain-JAX reference (matches the PyTorch module semantics).
    (w1, b1, w2, b2, w3, b3, w4, b4) = params

    def selu_ref(v):
        return SELU_SCALE * jnp.where(v > 0, v, SELU_ALPHA * (jnp.exp(v) - 1.0))

    h = selu_ref(x @ w1 + b1)
    h = selu_ref(h @ w2 + b2)
    h = selu_ref(h @ w3 + b3)
    y = h @ w4 + b4
    ref = y / jnp.maximum(jnp.sqrt(jnp.sum(y * y, axis=1, keepdims=True)), L2_EPS)

    def run(prepared):
        # Prefer single-buffered constant specs; fall back to default
        # double-buffering if this Pallas build rejects Buffered(1).
        last_err = None
        for sb in (True, False):
            try:
                f = jax.jit(lambda xx, pp: costom_mlp_forward(
                    xx, pp, output_dim=output_dim, single_buffer_weights=sb))
                o = f(x, prepared)
                jax.block_until_ready(o)
                return o
            except Exception as e:  # noqa: BLE001 - retry with safe config
                last_err = e
        raise last_err

    # Exact-math check: f32 weights path (same kernel, f32 MXU inputs).
    prep_f32 = prepare_params(params, compute_dtype=jnp.float32)
    out_f32 = run(prep_f32)
    assert out_f32.shape == (batch, output_dim)
    assert jnp.allclose(out_f32, ref, atol=1e-4, rtol=1e-4)

    # Default fast path: bf16 MXU inputs, f32 accumulation (looser tolerance
    # is expected bf16 rounding, not a bug).
    prep_bf16 = prepare_params(params)  # compute_dtype=bfloat16
    out_bf16 = run(prep_bf16)
    assert out_bf16.shape == (batch, output_dim)
    assert jnp.allclose(out_bf16, ref, atol=3e-2, rtol=3e-2)

    print("KERNEL_OK")
</pallas_src>

<mosaic_0001>
module attributes {stable_mosaic.version = 11 : i64} {
  func.func @mlp_kernel(%arg0: i32, %arg1: memref<8x128xf32, #tpu.memory_space<vmem>>, %arg2: memref<128x128xf32, #tpu.memory_space<vmem>>, %arg3: memref<1x128xf32, #tpu.memory_space<vmem>>, %arg4: memref<128x128xf32, #tpu.memory_space<vmem>>, %arg5: memref<1x128xf32, #tpu.memory_space<vmem>>, %arg6: memref<128x128xf32, #tpu.memory_space<vmem>>, %arg7: memref<1x128xf32, #tpu.memory_space<vmem>>, %arg8: memref<128x128xf32, #tpu.memory_space<vmem>>, %arg9: memref<1x128xf32, #tpu.memory_space<vmem>>, %arg10: memref<8x128xf32, #tpu.memory_space<vmem>>) attributes {dimension_semantics = [#tpu.dimension_semantics<parallel>], iteration_bounds = array<i64: 1>, scalar_prefetch = 0 : i64, scratch_operands = 0 : i64, tpu.core_type = #tpu.core_type<tc>, window_params = [{transform_indices = @transform_0, window_bounds = array<i64: 8, 128>}, {pipeline_mode = #tpu.pipeline_mode<synchronous>, transform_indices = @transform_1, window_bounds = array<i64: 128, 128>}, {pipeline_mode = #tpu.pipeline_mode<synchronous>, transform_indices = @transform_2, window_bounds = array<i64: 1, 128>}, {pipeline_mode = #tpu.pipeline_mode<synchronous>, transform_indices = @transform_3, window_bounds = array<i64: 128, 128>}, {pipeline_mode = #tpu.pipeline_mode<synchronous>, transform_indices = @transform_4, window_bounds = array<i64: 1, 128>}, {pipeline_mode = #tpu.pipeline_mode<synchronous>, transform_indices = @transform_5, window_bounds = array<i64: 128, 128>}, {pipeline_mode = #tpu.pipeline_mode<synchronous>, transform_indices = @transform_6, window_bounds = array<i64: 1, 128>}, {pipeline_mode = #tpu.pipeline_mode<synchronous>, transform_indices = @transform_7, window_bounds = array<i64: 128, 128>}, {pipeline_mode = #tpu.pipeline_mode<synchronous>, transform_indices = @transform_8, window_bounds = array<i64: 1, 128>}, {transform_indices = @transform_9, window_bounds = array<i64: 8, 128>}]} {
    %c0 = arith.constant 0 : index
    %c0_0 = arith.constant 0 : index
    %0 = vector.load %arg1[%c0, %c0_0] : memref<8x128xf32, #tpu.memory_space<vmem>>, vector<8x128xf32>
    %c0_1 = arith.constant 0 : index
    %c0_2 = arith.constant 0 : index
    %1 = vector.load %arg2[%c0_1, %c0_2] : memref<128x128xf32, #tpu.memory_space<vmem>>, vector<128x128xf32>
    %cst = arith.constant dense<0.000000e+00> : vector<8x128xf32>
    %2 = tpu.matmul %0, %1, %cst {dimension_numbers = #tpu.dot_dimension_numbers<[1], [0], [0], [1], [0, 0, 1, 1], [], []>} : vector<8x128xf32>, vector<128x128xf32>, vector<8x128xf32> -> vector<8x128xf32>
    %c0_3 = arith.constant 0 : index
    %c0_4 = arith.constant 0 : index
    %3 = vector.load %arg3[%c0_3, %c0_4] : memref<1x128xf32, #tpu.memory_space<vmem>>, vector<1x128xf32>
    %4 = vector.broadcast %3 : vector<1x128xf32> to vector<8x128xf32>
    %5 = arith.addf %2, %4 : vector<8x128xf32>
    %cst_5 = arith.constant 0.000000e+00 : f32
    %6 = vector.broadcast %cst_5 : f32 to vector<8x128xf32>
    %7 = arith.cmpf ogt, %5, %6 : vector<8x128xf32>
    %cst_6 = arith.constant 0.000000e+00 : f32
    %8 = vector.broadcast %cst_6 : f32 to vector<8x128xf32>
    %9 = arith.minimumf %5, %8 : vector<8x128xf32>
    %10 = math.exp %9 : vector<8x128xf32>
    %cst_7 = arith.constant 1.000000e+00 : f32
    %11 = vector.broadcast %cst_7 : f32 to vector<8x128xf32>
    %12 = arith.subf %10, %11 : vector<8x128xf32>
    %cst_8 = arith.constant 1.67326319 : f32
    %13 = vector.broadcast %cst_8 : f32 to vector<8x128xf32>
    %14 = arith.mulf %13, %12 : vector<8x128xf32>
    %15 = arith.select %7, %5, %14 : vector<8x128xi1>, vector<8x128xf32>
    %c0_9 = arith.constant 0 : index
    %c0_10 = arith.constant 0 : index
    %16 = vector.load %arg4[%c0_9, %c0_10] : memref<128x128xf32, #tpu.memory_space<vmem>>, vector<128x128xf32>
    %cst_11 = arith.constant dense<0.000000e+00> : vector<8x128xf32>
    %17 = tpu.matmul %15, %16, %cst_11 {dimension_numbers = #tpu.dot_dimension_numbers<[1], [0], [0], [1], [0, 0, 1, 1], [], []>} : vector<8x128xf32>, vector<128x128xf32>, vector<8x128xf32> -> vector<8x128xf32>
    %c0_12 = arith.constant 0 : index
    %c0_13 = arith.constant 0 : index
    %18 = vector.load %arg5[%c0_12, %c0_13] : memref<1x128xf32, #tpu.memory_space<vmem>>, vector<1x128xf32>
    %19 = vector.broadcast %18 : vector<1x128xf32> to vector<8x128xf32>
    %20 = arith.addf %17, %19 : vector<8x128xf32>
    %cst_14 = arith.constant 0.000000e+00 : f32
    %21 = vector.broadcast %cst_14 : f32 to vector<8x128xf32>
    %22 = arith.cmpf ogt, %20, %21 : vector<8x128xf32>
    %cst_15 = arith.constant 0.000000e+00 : f32
    %23 = vector.broadcast %cst_15 : f32 to vector<8x128xf32>
    %24 = arith.minimumf %20, %23 : vector<8x128xf32>
    %25 = math.exp %24 : vector<8x128xf32>
    %cst_16 = arith.constant 1.000000e+00 : f32
    %26 = vector.broadcast %cst_16 : f32 to vector<8x128xf32>
    %27 = arith.subf %25, %26 : vector<8x128xf32>
    %cst_17 = arith.constant 1.67326319 : f32
    %28 = vector.broadcast %cst_17 : f32 to vector<8x128xf32>
    %29 = arith.mulf %28, %27 : vector<8x128xf32>
    %30 = arith.select %22, %20, %29 : vector<8x128xi1>, vector<8x128xf32>
    %c0_18 = arith.constant 0 : index
    %c0_19 = arith.constant 0 : index
    %31 = vector.load %arg6[%c0_18, %c0_19] : memref<128x128xf32, #tpu.memory_space<vmem>>, vector<128x128xf32>
    %cst_20 = arith.constant dense<0.000000e+00> : vector<8x128xf32>
    %32 = tpu.matmul %30, %31, %cst_20 {dimension_numbers = #tpu.dot_dimension_numbers<[1], [0], [0], [1], [0, 0, 1, 1], [], []>} : vector<8x128xf32>, vector<128x128xf32>, vector<8x128xf32> -> vector<8x128xf32>
    %c0_21 = arith.constant 0 : index
    %c0_22 = arith.constant 0 : index
    %33 = vector.load %arg7[%c0_21, %c0_22] : memref<1x128xf32, #tpu.memory_space<vmem>>, vector<1x128xf32>
    %34 = vector.broadcast %33 : vector<1x128xf32> to vector<8x128xf32>
    %35 = arith.addf %32, %34 : vector<8x128xf32>
    %cst_23 = arith.constant 0.000000e+00 : f32
    %36 = vector.broadcast %cst_23 : f32 to vector<8x128xf32>
    %37 = arith.cmpf ogt, %35, %36 : vector<8x128xf32>
    %cst_24 = arith.constant 0.000000e+00 : f32
    %38 = vector.broadcast %cst_24 : f32 to vector<8x128xf32>
    %39 = arith.minimumf %35, %38 : vector<8x128xf32>
    %40 = math.exp %39 : vector<8x128xf32>
    %cst_25 = arith.constant 1.000000e+00 : f32
    %41 = vector.broadcast %cst_25 : f32 to vector<8x128xf32>
    %42 = arith.subf %40, %41 : vector<8x128xf32>
    %cst_26 = arith.constant 1.67326319 : f32
    %43 = vector.broadcast %cst_26 : f32 to vector<8x128xf32>
    %44 = arith.mulf %43, %42 : vector<8x128xf32>
    %45 = arith.select %37, %35, %44 : vector<8x128xi1>, vector<8x128xf32>
    %c0_27 = arith.constant 0 : index
    %c0_28 = arith.constant 0 : index
    %46 = vector.load %arg8[%c0_27, %c0_28] : memref<128x128xf32, #tpu.memory_space<vmem>>, vector<128x128xf32>
    %cst_29 = arith.constant dense<0.000000e+00> : vector<8x128xf32>
    %47 = tpu.matmul %45, %46, %cst_29 {dimension_numbers = #tpu.dot_dimension_numbers<[1], [0], [0], [1], [0, 0, 1, 1], [], []>} : vector<8x128xf32>, vector<128x128xf32>, vector<8x128xf32> -> vector<8x128xf32>
    %c0_30 = arith.constant 0 : index
    %c0_31 = arith.constant 0 : index
    %48 = vector.load %arg9[%c0_30, %c0_31] : memref<1x128xf32, #tpu.memory_space<vmem>>, vector<1x128xf32>
    %49 = vector.broadcast %48 : vector<1x128xf32> to vector<8x128xf32>
    %50 = arith.addf %47, %49 : vector<8x128xf32>
    %51 = arith.mulf %50, %50 : vector<8x128xf32>
    %cst_32 = arith.constant dense<0.000000e+00> : vector<8xf32>
    %52 = vector.multi_reduction <add>, %51, %cst_32 [1] : vector<8x128xf32> to vector<8xf32>
    %53 = vector.shape_cast %52 : vector<8xf32> to vector<8x1xf32>
    %cst_33 = arith.constant 1.000000e-24 : f32
    %54 = vector.broadcast %cst_33 : f32 to vector<8x1xf32>
    %55 = arith.maximumf %53, %54 : vector<8x1xf32>
    %56 = math.rsqrt %55 : vector<8x1xf32>
    %57 = vector.broadcast %56 : vector<8x1xf32> to vector<8x128xf32>
    %58 = arith.mulf %50, %57 : vector<8x128xf32>
    %c0_34 = arith.constant 0 : index
    %c0_35 = arith.constant 0 : index
    %59 = vector.load %arg10[%c0_34, %c0_35] : memref<8x128xf32, #tpu.memory_space<vmem>>, vector<8x128xf32>
    tpu.vector_store %arg10[%c0_34, %c0_35], %58 {strides = array<i32>} : memref<8x128xf32, #tpu.memory_space<vmem>>, vector<8x128xf32>,
    return
  }
  func.func @transform_0(%arg0: i32) -> (i32, i32) {
    %c0_i32 = arith.constant 0 : i32
    %c0_i32_0 = arith.constant 0 : i32
    return %arg0, %c0_i32 : i32, i32
  }
  func.func @transform_1(%arg0: i32) -> (i32, i32) {
    %c0_i32 = arith.constant 0 : i32
    %c0_i32_0 = arith.constant 0 : i32
    %c0_i32_1 = arith.constant 0 : i32
    return %c0_i32, %c0_i32_0 : i32, i32
  }
  func.func @transform_2(%arg0: i32) -> (i32, i32) {
    %c0_i32 = arith.constant 0 : i32
    %c0_i32_0 = arith.constant 0 : i32
    %c0_i32_1 = arith.constant 0 : i32
    return %c0_i32, %c0_i32_0 : i32, i32
  }
  func.func @transform_3(%arg0: i32) -> (i32, i32) {
    %c0_i32 = arith.constant 0 : i32
    %c0_i32_0 = arith.constant 0 : i32
    %c0_i32_1 = arith.constant 0 : i32
    return %c0_i32, %c0_i32_0 : i32, i32
  }
  func.func @transform_4(%arg0: i32) -> (i32, i32) {
    %c0_i32 = arith.constant 0 : i32
    %c0_i32_0 = arith.constant 0 : i32
    %c0_i32_1 = arith.constant 0 : i32
    return %c0_i32, %c0_i32_0 : i32, i32
  }
  func.func @transform_5(%arg0: i32) -> (i32, i32) {
    %c0_i32 = arith.constant 0 : i32
    %c0_i32_0 = arith.constant 0 : i32
    %c0_i32_1 = arith.constant 0 : i32
    return %c0_i32, %c0_i32_0 : i32, i32
  }
  func.func @transform_6(%arg0: i32) -> (i32, i32) {
    %c0_i32 = arith.constant 0 : i32
    %c0_i32_0 = arith.constant 0 : i32
    %c0_i32_1 = arith.constant 0 : i32
    return %c0_i32, %c0_i32_0 : i32, i32
  }
  func.func @transform_7(%arg0: i32) -> (i32, i32) {
    %c0_i32 = arith.constant 0 : i32
    %c0_i32_0 = arith.constant 0 : i32
    %c0_i32_1 = arith.constant 0 : i32
    return %c0_i32, %c0_i32_0 : i32, i32
  }
  func.func @transform_8(%arg0: i32) -> (i32, i32) {
    %c0_i32 = arith.constant 0 : i32
    %c0_i32_0 = arith.constant 0 : i32
    %c0_i32_1 = arith.constant 0 : i32
    return %c0_i32, %c0_i32_0 : i32, i32
  }
  func.func @transform_9(%arg0: i32) -> (i32, i32) {
    %c0_i32 = arith.constant 0 : i32
    %c0_i32_0 = arith.constant 0 : i32
    return %arg0, %c0_i32 : i32, i32
  }
}

module attributes {stable_mosaic.version = 11 : i64} {
  func.func @mlp_kernel(%arg0: i32, %arg1: memref<8x128xf32, #tpu.memory_space<vmem>>, %arg2: memref<128x128xf32, #tpu.memory_space<vmem>>, %arg3: memref<1x128xf32, #tpu.memory_space<vmem>>, %arg4: memref<128x128xf32, #tpu.memory_space<vmem>>, %arg5: memref<1x128xf32, #tpu.memory_space<vmem>>, %arg6: memref<128x128xf32, #tpu.memory_space<vmem>>, %arg7: memref<1x128xf32, #tpu.memory_space<vmem>>, %arg8: memref<128x128xf32, #tpu.memory_space<vmem>>, %arg9: memref<1x128xf32, #tpu.memory_space<vmem>>, %arg10: memref<8x128xf32, #tpu.memory_space<vmem>>) attributes {dimension_semantics = [#tpu.dimension_semantics<parallel>], iteration_bounds = array<i64: 1>, scalar_prefetch = 0 : i64, scratch_operands = 0 : i64, tpu.core_type = #tpu.core_type<tc>, window_params = [{transform_indices = @transform_0, window_bounds = array<i64: 8, 128>}, {pipeline_mode = #tpu.pipeline_mode<synchronous>, transform_indices = @transform_1, window_bounds = array<i64: 128, 128>}, {pipeline_mode = #tpu.pipeline_mode<synchronous>, transform_indices = @transform_2, window_bounds = array<i64: 1, 128>}, {pipeline_mode = #tpu.pipeline_mode<synchronous>, transform_indices = @transform_3, window_bounds = array<i64: 128, 128>}, {pipeline_mode = #tpu.pipeline_mode<synchronous>, transform_indices = @transform_4, window_bounds = array<i64: 1, 128>}, {pipeline_mode = #tpu.pipeline_mode<synchronous>, transform_indices = @transform_5, window_bounds = array<i64: 128, 128>}, {pipeline_mode = #tpu.pipeline_mode<synchronous>, transform_indices = @transform_6, window_bounds = array<i64: 1, 128>}, {pipeline_mode = #tpu.pipeline_mode<synchronous>, transform_indices = @transform_7, window_bounds = array<i64: 128, 128>}, {pipeline_mode = #tpu.pipeline_mode<synchronous>, transform_indices = @transform_8, window_bounds = array<i64: 1, 128>}, {transform_indices = @transform_9, window_bounds = array<i64: 8, 128>}]} {
    %c0 = arith.constant 0 : index
    %c0_0 = arith.constant 0 : index
    %0 = vector.load %arg1[%c0, %c0_0] : memref<8x128xf32, #tpu.memory_space<vmem>>, vector<8x128xf32>
    %c0_1 = arith.constant 0 : index
    %c0_2 = arith.constant 0 : index
    %1 = vector.load %arg2[%c0_1, %c0_2] : memref<128x128xf32, #tpu.memory_space<vmem>>, vector<128x128xf32>
    %cst = arith.constant dense<0.000000e+00> : vector<8x128xf32>
    %2 = tpu.matmul %0, %1, %cst {dimension_numbers = #tpu.dot_dimension_numbers<[1], [0], [0], [1], [0, 0, 1, 1], [], []>} : vector<8x128xf32>, vector<128x128xf32>, vector<8x128xf32> -> vector<8x128xf32>
    %c0_3 = arith.constant 0 : index
    %c0_4 = arith.constant 0 : index
    %3 = vector.load %arg3[%c0_3, %c0_4] : memref<1x128xf32, #tpu.memory_space<vmem>>, vector<1x128xf32>
    %4 = vector.broadcast %3 : vector<1x128xf32> to vector<8x128xf32>
    %5 = arith.addf %2, %4 : vector<8x128xf32>
    %cst_5 = arith.constant 0.000000e+00 : f32
    %6 = vector.broadcast %cst_5 : f32 to vector<8x128xf32>
    %7 = arith.cmpf ogt, %5, %6 : vector<8x128xf32>
    %cst_6 = arith.constant 0.000000e+00 : f32
    %8 = vector.broadcast %cst_6 : f32 to vector<8x128xf32>
    %9 = arith.minimumf %5, %8 : vector<8x128xf32>
    %10 = math.exp %9 : vector<8x128xf32>
    %cst_7 = arith.constant 1.000000e+00 : f32
    %11 = vector.broadcast %cst_7 : f32 to vector<8x128xf32>
    %12 = arith.subf %10, %11 : vector<8x128xf32>
    %cst_8 = arith.constant 1.67326319 : f32
    %13 = vector.broadcast %cst_8 : f32 to vector<8x128xf32>
    %14 = arith.mulf %13, %12 : vector<8x128xf32>
    %15 = arith.select %7, %5, %14 : vector<8x128xi1>, vector<8x128xf32>
    %c0_9 = arith.constant 0 : index
    %c0_10 = arith.constant 0 : index
    %16 = vector.load %arg4[%c0_9, %c0_10] : memref<128x128xf32, #tpu.memory_space<vmem>>, vector<128x128xf32>
    %cst_11 = arith.constant dense<0.000000e+00> : vector<8x128xf32>
    %17 = tpu.matmul %15, %16, %cst_11 {dimension_numbers = #tpu.dot_dimension_numbers<[1], [0], [0], [1], [0, 0, 1, 1], [], []>} : vector<8x128xf32>, vector<128x128xf32>, vector<8x128xf32> -> vector<8x128xf32>
    %c0_12 = arith.constant 0 : index
    %c0_13 = arith.constant 0 : index
    %18 = vector.load %arg5[%c0_12, %c0_13] : memref<1x128xf32, #tpu.memory_space<vmem>>, vector<1x128xf32>
    %19 = vector.broadcast %18 : vector<1x128xf32> to vector<8x128xf32>
    %20 = arith.addf %17, %19 : vector<8x128xf32>
    %cst_14 = arith.constant 0.000000e+00 : f32
    %21 = vector.broadcast %cst_14 : f32 to vector<8x128xf32>
    %22 = arith.cmpf ogt, %20, %21 : vector<8x128xf32>
    %cst_15 = arith.constant 0.000000e+00 : f32
    %23 = vector.broadcast %cst_15 : f32 to vector<8x128xf32>
    %24 = arith.minimumf %20, %23 : vector<8x128xf32>
    %25 = math.exp %24 : vector<8x128xf32>
    %cst_16 = arith.constant 1.000000e+00 : f32
    %26 = vector.broadcast %cst_16 : f32 to vector<8x128xf32>
    %27 = arith.subf %25, %26 : vector<8x128xf32>
    %cst_17 = arith.constant 1.67326319 : f32
    %28 = vector.broadcast %cst_17 : f32 to vector<8x128xf32>
    %29 = arith.mulf %28, %27 : vector<8x128xf32>
    %30 = arith.select %22, %20, %29 : vector<8x128xi1>, vector<8x128xf32>
    %c0_18 = arith.constant 0 : index
    %c0_19 = arith.constant 0 : index
    %31 = vector.load %arg6[%c0_18, %c0_19] : memref<128x128xf32, #tpu.memory_space<vmem>>, vector<128x128xf32>
    %cst_20 = arith.constant dense<0.000000e+00> : vector<8x128xf32>
    %32 = tpu.matmul %30, %31, %cst_20 {dimension_numbers = #tpu.dot_dimension_numbers<[1], [0], [0], [1], [0, 0, 1, 1], [], []>} : vector<8x128xf32>, vector<128x128xf32>, vector<8x128xf32> -> vector<8x128xf32>
    %c0_21 = arith.constant 0 : index
    %c0_22 = arith.constant 0 : index
    %33 = vector.load %arg7[%c0_21, %c0_22] : memref<1x128xf32, #tpu.memory_space<vmem>>, vector<1x128xf32>
    %34 = vector.broadcast %33 : vector<1x128xf32> to vector<8x128xf32>
    %35 = arith.addf %32, %34 : vector<8x128xf32>
    %cst_23 = arith.constant 0.000000e+00 : f32
    %36 = vector.broadcast %cst_23 : f32 to vector<8x128xf32>
    %37 = arith.cmpf ogt, %35, %36 : vector<8x128xf32>
    %cst_24 = arith.constant 0.000000e+00 : f32
    %38 = vector.broadcast %cst_24 : f32 to vector<8x128xf32>
    %39 = arith.minimumf %35, %38 : vector<8x128xf32>
    %40 = math.exp %39 : vector<8x128xf32>
    %cst_25 = arith.constant 1.000000e+00 : f32
    %41 = vector.broadcast %cst_25 : f32 to vector<8x128xf32>
    %42 = arith.subf %40, %41 : vector<8x128xf32>
    %cst_26 = arith.constant 1.67326319 : f32
    %43 = vector.broadcast %cst_26 : f32 to vector<8x128xf32>
    %44 = arith.mulf %43, %42 : vector<8x128xf32>
    %45 = arith.select %37, %35, %44 : vector<8x128xi1>, vector<8x128xf32>
    %c0_27 = arith.constant 0 : index
    %c0_28 = arith.constant 0 : index
    %46 = vector.load %arg8[%c0_27, %c0_28] : memref<128x128xf32, #tpu.memory_space<vmem>>, vector<128x128xf32>
    %cst_29 = arith.constant dense<0.000000e+00> : vector<8x128xf32>
    %47 = tpu.matmul %45, %46, %cst_29 {dimension_numbers = #tpu.dot_dimension_numbers<[1], [0], [0], [1], [0, 0, 1, 1], [], []>} : vector<8x128xf32>, vector<128x128xf32>, vector<8x128xf32> -> vector<8x128xf32>
    %c0_30 = arith.constant 0 : index
    %c0_31 = arith.constant 0 : index
    %48 = vector.load %arg9[%c0_30, %c0_31] : memref<1x128xf32, #tpu.memory_space<vmem>>, vector<1x128xf32>
    %49 = vector.broadcast %48 : vector<1x128xf32> to vector<8x128xf32>
    %50 = arith.addf %47, %49 : vector<8x128xf32>
    %51 = arith.mulf %50, %50 : vector<8x128xf32>
    %cst_32 = arith.constant dense<0.000000e+00> : vector<8xf32>
    %52 = vector.multi_reduction <add>, %51, %cst_32 [1] : vector<8x128xf32> to vector<8xf32>
    %53 = vector.shape_cast %52 : vector<8xf32> to vector<8x1xf32>
    %cst_33 = arith.constant 1.000000e-24 : f32
    %54 = vector.broadcast %cst_33 : f32 to vector<8x1xf32>
    %55 = arith.maximumf %53, %54 : vector<8x1xf32>
    %56 = math.rsqrt %55 : vector<8x1xf32>
    %57 = vector.broadcast %56 : vector<8x1xf32> to vector<8x128xf32>
    %58 = arith.mulf %50, %57 : vector<8x128xf32>
    %c0_34 = arith.constant 0 : index
    %c0_35 = arith.constant 0 : index
    %59 = vector.load %arg10[%c0_34, %c0_35] : memref<8x128xf32, #tpu.memory_space<vmem>>, vector<8x128xf32>
    tpu.vector_store %arg10[%c0_34, %c0_35], %58 {strides = array<i32>} : memref<8x128xf32, #tpu.memory_space<vmem>>, vector<8x128xf32>,
    return
  }
  func.func @transform_0(%arg0: i32) -> (i32, i32) {
    %c0_i32 = arith.constant 0 : i32
    %c0_i32_0 = arith.constant 0 : i32
    return %arg0, %c0_i32 : i32, i32
  }
  func.func @transform_1(%arg0: i32) -> (i32, i32) {
    %c0_i32 = arith.constant 0 : i32
    %c0_i32_0 = arith.constant 0 : i32
    %c0_i32_1 = arith.constant 0 : i32
    return %c0_i32, %c0_i32_0 : i32, i32
  }
  func.func @transform_2(%arg0: i32) -> (i32, i32) {
    %c0_i32 = arith.constant 0 : i32
    %c0_i32_0 = arith.constant 0 : i32
    %c0_i32_1 = arith.constant 0 : i32
    return %c0_i32, %c0_i32_0 : i32, i32
  }
  func.func @transform_3(%arg0: i32) -> (i32, i32) {
    %c0_i32 = arith.constant 0 : i32
    %c0_i32_0 = arith.constant 0 : i32
    %c0_i32_1 = arith.constant 0 : i32
    return %c0_i32, %c0_i32_0 : i32, i32
  }
  func.func @transform_4(%arg0: i32) -> (i32, i32) {
    %c0_i32 = arith.constant 0 : i32
    %c0_i32_0 = arith.constant 0 : i32
    %c0_i32_1 = arith.constant 0 : i32
    return %c0_i32, %c0_i32_0 : i32, i32
  }
  func.func @transform_5(%arg0: i32) -> (i32, i32) {
    %c0_i32 = arith.constant 0 : i32
    %c0_i32_0 = arith.constant 0 : i32
    %c0_i32_1 = arith.constant 0 : i32
    return %c0_i32, %c0_i32_0 : i32, i32
  }
  func.func @transform_6(%arg0: i32) -> (i32, i32) {
    %c0_i32 = arith.constant 0 : i32
    %c0_i32_0 = arith.constant 0 : i32
    %c0_i32_1 = arith.constant 0 : i32
    return %c0_i32, %c0_i32_0 : i32, i32
  }
  func.func @transform_7(%arg0: i32) -> (i32, i32) {
    %c0_i32 = arith.constant 0 : i32
    %c0_i32_0 = arith.constant 0 : i32
    %c0_i32_1 = arith.constant 0 : i32
    return %c0_i32, %c0_i32_0 : i32, i32
  }
  func.func @transform_8(%arg0: i32) -> (i32, i32) {
    %c0_i32 = arith.constant 0 : i32
    %c0_i32_0 = arith.constant 0 : i32
    %c0_i32_1 = arith.constant 0 : i32
    return %c0_i32, %c0_i32_0 : i32, i32
  }
  func.func @transform_9(%arg0: i32) -> (i32, i32) {
    %c0_i32 = arith.constant 0 : i32
    %c0_i32_0 = arith.constant 0 : i32
    return %arg0, %c0_i32 : i32, i32
  }
}

</mosaic_0001>

<llo_original>
// kernel: _lambda_.1
$region0: #{_lambda_.1}
  #allocation0 [shape = 'u32[]', space=smem, size = 0x4, offset = 0x4, fixed_abs, tag = 'smem constant byte address 0x4 - core index']
  #allocation1 [shape = 'u32[144,128]{1,0:T(1,128)}', space=vmem, size = 0x12000, scoped, tag = 'internal scratch']
  %s0 = inlined_call_operand.vmem [shape: f32[8,128], index: 0, kind: input, shape index: {}]
  %s1 = inlined_call_operand.hbm [shape: f32[128,128], index: 1, kind: input, shape index: {}]
  %s2 = inlined_call_operand.vmem [shape: f32[1,128], index: 2, kind: input, shape index: {}]
  %s3 = inlined_call_operand.hbm [shape: f32[128,128], index: 3, kind: input, shape index: {}]
  %s4 = inlined_call_operand.vmem [shape: f32[1,128], index: 4, kind: input, shape index: {}]
  %s5 = inlined_call_operand.hbm [shape: f32[128,128], index: 5, kind: input, shape index: {}]
  %s6 = inlined_call_operand.vmem [shape: f32[1,128], index: 6, kind: input, shape index: {}]
  %s7 = inlined_call_operand.hbm [shape: f32[128,128], index: 7, kind: input, shape index: {}]
  %s8 = inlined_call_operand.vmem [shape: f32[1,128], index: 8, kind: input, shape index: {}]
  %s9 = inlined_call_operand.vmem [shape: f32[8,128], index: 9, kind: output, shape index: {}]
  %s10 = sld [smem:[#allocation0]]
  $region62: #{_lambda_.1} parent=0
    _
  %s12 = ssub.s32 1, %s10
  %s13 = scalar_select 0, %s12, %s10
  $region1: #{_lambda_.1} parent=0
    #allocation2 [shape = 'u8[65536]{0}', space=vmem, size = 0x10000, scoped, tag = 'input window, operand 1, single buffered']
    #allocation3 [shape = 's32[1]{0}', space=sflag, size = 0x4, scoped, tag = 'scoped memory for _lambda_.1']
    #allocation4 [shape = 'u8[65536]{0}', space=vmem, size = 0x10000, scoped, tag = 'input window, operand 3, single buffered']
    #allocation5 [shape = 's32[1]{0}', space=sflag, size = 0x4, scoped, tag = 'scoped memory for _lambda_.1']
    #allocation6 [shape = 'u8[65536]{0}', space=vmem, size = 0x10000, scoped, tag = 'input window, operand 5, single buffered']
    #allocation7 [shape = 'u8[65536]{0}', space=vmem, size = 0x10000, scoped, tag = 'input window, operand 7, single buffered']
    #allocation8 [shape = 's32[1]{0}', space=sflag, size = 0x4, scoped, tag = 'scoped memory for _lambda_.1']
    %14 = vsyncpa [#allocation3], 0
    %15 = vsyncpa [#allocation5], 0
    %16 = vsyncpa [#allocation8], 0
    // Predicated region
    $region2: #{_lambda_.1} parent=1 // pred_check
      _
    $region3: #{_lambda_.1} parent=1 // pred_check_branch
      %18 = sbr.rel (0) target = $region5
    $region4: #{_lambda_.1} parent=1 // pred_region
      _
    $region5: #{_lambda_.1} parent=1 // pred_fallthru
      _
    // Predicated region
    $region6: #{_lambda_.1} parent=1 // pred_check
      _
    $region7: #{_lambda_.1} parent=1 // pred_check_branch
      %20 = sbr.rel (0) target = $region9
    $region8: #{_lambda_.1} parent=1 // pred_region
      %s22 = ssub.s32 2048, 2048
      %23 = vsyncadd [#allocation3], %s22
      %s24 = sshll.u32 [#allocation2], 4
      %s25 = int_to_ptr.vmem [resolvable:$true] %s24
      %30 = dma.hbm_to_vmem [thread:$0]  %s1, 2048, %s25, [#allocation3], 128, 128, 8
    $region9: #{_lambda_.1} parent=1 // pred_fallthru
      _
    // Predicated region
    $region10: #{_lambda_.1} parent=1 // pred_check
      _
    $region11: #{_lambda_.1} parent=1 // pred_check_branch
      %32 = sbr.rel (0) target = $region13
    $region12: #{_lambda_.1} parent=1 // pred_region
      _
    $region13: #{_lambda_.1} parent=1 // pred_fallthru
      _
    // Predicated region
    $region14: #{_lambda_.1} parent=1 // pred_check
      _
    $region15: #{_lambda_.1} parent=1 // pred_check_branch
      %34 = sbr.rel (0) target = $region17
    $region16: #{_lambda_.1} parent=1 // pred_region
      %s36 = ssub.s32 2048, 2048
      %37 = vsyncadd [#allocation5], %s36
      %s38 = sshll.u32 [#allocation4], 4
      %s39 = int_to_ptr.vmem [resolvable:$true] %s38
      %44 = dma.hbm_to_vmem [thread:$0]  %s3, 2048, %s39, [#allocation5], 128, 128, 8
    $region17: #{_lambda_.1} parent=1 // pred_fallthru
      _
    // Predicated region
    $region18: #{_lambda_.1} parent=1 // pred_check
      _
    $region19: #{_lambda_.1} parent=1 // pred_check_branch
      %46 = sbr.rel (0) target = $region21
    $region20: #{_lambda_.1} parent=1 // pred_region
      _
    $region21: #{_lambda_.1} parent=1 // pred_fallthru
      _
    // Predicated region
    $region22: #{_lambda_.1} parent=1 // pred_check
      _
    $region23: #{_lambda_.1} parent=1 // pred_check_branch
      %48 = sbr.rel (0) target = $region25
    $region24: #{_lambda_.1} parent=1 // pred_region
      %s50 = ssub.s32 2048, 2048
      %51 = vsyncadd [#allocation5], %s50
      %s52 = sshll.u32 [#allocation6], 4
      %s53 = int_to_ptr.vmem [resolvable:$true] %s52
      %58 = dma.hbm_to_vmem [thread:$0]  %s5, 2048, %s53, [#allocation5], 128, 128, 8
    $region25: #{_lambda_.1} parent=1 // pred_fallthru
      _
    // Predicated region
    $region26: #{_lambda_.1} parent=1 // pred_check
      _
    $region27: #{_lambda_.1} parent=1 // pred_check_branch
      %60 = sbr.rel (0) target = $region29
    $region28: #{_lambda_.1} parent=1 // pred_region
      _
    $region29: #{_lambda_.1} parent=1 // pred_fallthru
      _
    // Predicated region
    $region30: #{_lambda_.1} parent=1 // pred_check
      _
    $region31: #{_lambda_.1} parent=1 // pred_check_branch
      %62 = sbr.rel (0) target = $region33
    $region32: #{_lambda_.1} parent=1 // pred_region
      %s64 = ssub.s32 2048, 2048
      %65 = vsyncadd [#allocation8], %s64
      %s66 = sshll.u32 [#allocation7], 4
      %s67 = int_to_ptr.vmem [resolvable:$true] %s66
      %72 = dma.hbm_to_vmem [thread:$0]  %s7, 2048, %s67, [#allocation8], 128, 128, 8
    $region33: #{_lambda_.1} parent=1 // pred_fallthru
      _
    // Predicated region
    $region34: #{_lambda_.1} parent=1 // pred_check
      _
    $region35: #{_lambda_.1} parent=1 // pred_check_branch
      %74 = sbr.rel (0) target = $region37
    $region36: #{_lambda_.1} parent=1 // pred_region
      _
    $region37: #{_lambda_.1} parent=1 // pred_fallthru
      _
    // Predicated region
    $region38: #{_lambda_.1} parent=1 // pred_check
      _
    $region39: #{_lambda_.1} parent=1 // pred_check_branch
      %76 = sbr.rel (0) target = $region41
    $region40: #{_lambda_.1} parent=1 // pred_region
      %77 = dma.done [#allocation3], 2048
    $region41: #{_lambda_.1} parent=1 // pred_fallthru
      _
    // Predicated region
    $region42: #{_lambda_.1} parent=1 // pred_check
      _
    $region43: #{_lambda_.1} parent=1 // pred_check_branch
      %79 = sbr.rel (0) target = $region45
    $region44: #{_lambda_.1} parent=1 // pred_region
      %80 = dma.done [#allocation5], 2048
    $region45: #{_lambda_.1} parent=1 // pred_fallthru
      _
    // Predicated region
    $region46: #{_lambda_.1} parent=1 // pred_check
      _
    $region47: #{_lambda_.1} parent=1 // pred_check_branch
      %82 = sbr.rel (0) target = $region49
    $region48: #{_lambda_.1} parent=1 // pred_region
      %83 = dma.done [#allocation5], 2048
    $region49: #{_lambda_.1} parent=1 // pred_fallthru
      _
    // Predicated region
    $region50: #{_lambda_.1} parent=1 // pred_check
      _
    $region51: #{_lambda_.1} parent=1 // pred_check_branch
      %85 = sbr.rel (0) target = $region53
    $region52: #{_lambda_.1} parent=1 // pred_region
      %86 = dma.done [#allocation8], 2048
    $region53: #{_lambda_.1} parent=1 // pred_fallthru
      _
    %v87 = vld [vmem:[%s0] sm:$0xff]
    %v88 = vld [vmem:[#allocation2] sm:$0xff]
    %v89 = vld [vmem:[#allocation2 + $0x8] sm:$0xff]
    %v90 = vld [vmem:[#allocation2 + $0x10] sm:$0xff]
    %v91 = vld [vmem:[#allocation2 + $0x18] sm:$0xff]
    %v92 = vld [vmem:[#allocation2 + $0x20] sm:$0xff]
    %v93 = vld [vmem:[#allocation2 + $0x28] sm:$0xff]
    %v94 = vld [vmem:[#allocation2 + $0x30] sm:$0xff]
    %v95 = vld [vmem:[#allocation2 + $0x38] sm:$0xff]
    %v96 = vld [vmem:[#allocation2 + $0x40] sm:$0xff]
    %v97 = vld [vmem:[#allocation2 + $0x48] sm:$0xff]
    %v98 = vld [vmem:[#allocation2 + $0x50] sm:$0xff]
    %v99 = vld [vmem:[#allocation2 + $0x58] sm:$0xff]
    %v100 = vld [vmem:[#allocation2 + $0x60] sm:$0xff]
    %v101 = vld [vmem:[#allocation2 + $0x68] sm:$0xff]
    %v102 = vld [vmem:[#allocation2 + $0x70] sm:$0xff]
    %v103 = vld [vmem:[#allocation2 + $0x78] sm:$0xff]
    %v104 = vld [vmem:[%s2] sm:$0x1]
    %v106 = vlaneseq
    %v107 = vshrl.u32 %v106, 7
    %v108 = vsub.s32 0, %v107
    %v109 = vrot.slane %v104, %v108
    %111 = vmatprep.subr.mxu0 0.0
    %112 = vmatpush1.msra.mxu0 %v88
    %113 = vmatprep.subr.mxu0 0.0
    %114 = vmatpush1.msra.mxu0 %v89
    %115 = vmatprep.subr.mxu0 0.0
    %116 = vmatpush1.msra.mxu0 %v90
    %117 = vmatprep.subr.mxu0 0.0
    %118 = vmatpush1.msra.mxu0 %v91
    %119 = vmatprep.subr.mxu0 0.0
    %120 = vmatpush1.msra.mxu0 %v92
    %121 = vmatprep.subr.mxu0 0.0
    %122 = vmatpush1.msra.mxu0 %v93
    %123 = vmatprep.subr.mxu0 0.0
    %124 = vmatpush1.msra.mxu0 %v94
    %125 = vmatprep.subr.mxu0 0.0
    %126 = vmatpush1.msra.mxu0 %v95
    %127 = vmatprep.subr.mxu0 0.0
    %128 = vmatpush1.msra.mxu0 %v96
    %129 = vmatprep.subr.mxu0 0.0
    %130 = vmatpush1.msra.mxu0 %v97
    %131 = vmatprep.subr.mxu0 0.0
    %132 = vmatpush1.msra.mxu0 %v98
    %133 = vmatprep.subr.mxu0 0.0
    %134 = vmatpush1.msra.mxu0 %v99
    %135 = vmatprep.subr.mxu0 0.0
    %136 = vmatpush1.msra.mxu0 %v100
    %137 = vmatprep.subr.mxu0 0.0
    %138 = vmatpush1.msra.mxu0 %v101
    %139 = vmatprep.subr.mxu0 0.0
    %140 = vmatpush1.msra.mxu0 %v102
    %141 = vmatprep.subr.mxu0 0.0
    %142 = vmatpush1.msra.mxu0 %v103
    %143 = vmatprep.subr.mxu0 0.0
    %144 = vmatpush1.msra.mxu0 0.0
    %145 = vmatprep.subr.mxu0 0.0
    %146 = vmatpush1.msra.mxu0 0.0
    %147 = vmatprep.subr.mxu0 0.0
    %148 = vmatpush1.msra.mxu0 0.0
    %149 = vmatprep.subr.mxu0 0.0
    %150 = vmatpush1.msra.mxu0 0.0
    %151 = vmatprep.subr.mxu0 0.0
    %152 = vmatpush1.msra.mxu0 0.0
    %153 = vmatprep.subr.mxu0 0.0
    %154 = vmatpush1.msra.mxu0 0.0
    %155 = vmatprep.subr.mxu0 0.0
    %156 = vmatpush1.msra.mxu0 0.0
    %157 = vmatprep.subr.mxu0 0.0
    %158 = vmatpush1.msra.mxu0 0.0
    %159 = vmatprep.subr.mxu0 0.0
    %160 = vmatpush1.msra.mxu0 0.0
    %161 = vmatprep.subr.mxu0 0.0
    %162 = vmatpush1.msra.mxu0 0.0
    %163 = vmatprep.subr.mxu0 0.0
    %164 = vmatpush1.msra.mxu0 0.0
    %165 = vmatprep.subr.mxu0 0.0
    %166 = vmatpush1.msra.mxu0 0.0
    %167 = vmatprep.subr.mxu0 0.0
    %168 = vmatpush1.msra.mxu0 0.0
    %169 = vmatprep.subr.mxu0 0.0
    %170 = vmatpush1.msra.mxu0 0.0
    %171 = vmatprep.subr.mxu0 0.0
    %172 = vmatpush1.msra.mxu0 0.0
    %173 = vmatprep.subr.mxu0 0.0
    %174 = vmatpush1.msra.mxu0 0.0
    %175 = vmatprep.mubr.f32.mxu0 0.0
    %176 = vmatmul.mubr.f32.gmra.mrb[0].mxu0 %v87
    %v177 = vpop.f32.mrb[0].mxu0
    %v178 = vadd.f32 %v109, %v177
    %v179 = vpop.f32.mrb[0].mxu0
    %180 = vdwg.mxu0
    %vm181 = vcmp.gt.f32.partialorder %v178, 0.0
    %v182 = vmin.f32 %v178, 0.0
    %v183 = vmul.f32 %v182, 1.442695
    %v184 = vpow.pop %v183
    %v185 = vsub.f32 %v184, 1.0
    %v186 = vmul.f32 %v185, 1.6732632
    %v187 = vsel %vm181, %v178, %v186
    %v188 = vld [vmem:[#allocation4] sm:$0xff]
    %v189 = vld [vmem:[#allocation4 + $0x8] sm:$0xff]
    %v190 = vld [vmem:[#allocation4 + $0x10] sm:$0xff]
    %v191 = vld [vmem:[#allocation4 + $0x18] sm:$0xff]
    %v192 = vld [vmem:[#allocation4 + $0x20] sm:$0xff]
    %v193 = vld [vmem:[#allocation4 + $0x28] sm:$0xff]
    %v194 = vld [vmem:[#allocation4 + $0x30] sm:$0xff]
    %v195 = vld [vmem:[#allocation4 + $0x38] sm:$0xff]
    %v196 = vld [vmem:[#allocation4 + $0x40] sm:$0xff]
    %v197 = vld [vmem:[#allocation4 + $0x48] sm:$0xff]
    %v198 = vld [vmem:[#allocation4 + $0x50] sm:$0xff]
    %v199 = vld [vmem:[#allocation4 + $0x58] sm:$0xff]
    %v200 = vld [vmem:[#allocation4 + $0x60] sm:$0xff]
    %v201 = vld [vmem:[#allocation4 + $0x68] sm:$0xff]
    %v202 = vld [vmem:[#allocation4 + $0x70] sm:$0xff]
    %v203 = vld [vmem:[#allocation4 + $0x78] sm:$0xff]
    %v204 = vld [vmem:[%s4] sm:$0x1]
    %v206 = vlaneseq
    %v207 = vshrl.u32 %v206, 7
    %v208 = vsub.s32 0, %v207
    %v209 = vrot.slane %v204, %v208
    %211 = vmatprep.subr.mxu0 0.0
    %212 = vmatpush1.msra.mxu0 %v188
    %213 = vmatprep.subr.mxu0 0.0
    %214 = vmatpush1.msra.mxu0 %v189
    %215 = vmatprep.subr.mxu0 0.0
    %216 = vmatpush1.msra.mxu0 %v190
    %217 = vmatprep.subr.mxu0 0.0
    %218 = vmatpush1.msra.mxu0 %v191
    %219 = vmatprep.subr.mxu0 0.0
    %220 = vmatpush1.msra.mxu0 %v192
    %221 = vmatprep.subr.mxu0 0.0
    %222 = vmatpush1.msra.mxu0 %v193
    %223 = vmatprep.subr.mxu0 0.0
    %224 = vmatpush1.msra.mxu0 %v194
    %225 = vmatprep.subr.mxu0 0.0
    %226 = vmatpush1.msra.mxu0 %v195
    %227 = vmatprep.subr.mxu0 0.0
    %228 = vmatpush1.msra.mxu0 %v196
    %229 = vmatprep.subr.mxu0 0.0
    %230 = vmatpush1.msra.mxu0 %v197
    %231 = vmatprep.subr.mxu0 0.0
    %232 = vmatpush1.msra.mxu0 %v198
    %233 = vmatprep.subr.mxu0 0.0
    %234 = vmatpush1.msra.mxu0 %v199
    %235 = vmatprep.subr.mxu0 0.0
    %236 = vmatpush1.msra.mxu0 %v200
    %237 = vmatprep.subr.mxu0 0.0
    %238 = vmatpush1.msra.mxu0 %v201
    %239 = vmatprep.subr.mxu0 0.0
    %240 = vmatpush1.msra.mxu0 %v202
    %241 = vmatprep.subr.mxu0 0.0
    %242 = vmatpush1.msra.mxu0 %v203
    %243 = vmatprep.subr.mxu0 0.0
    %244 = vmatpush1.msra.mxu0 0.0
    %245 = vmatprep.subr.mxu0 0.0
    %246 = vmatpush1.msra.mxu0 0.0
    %247 = vmatprep.subr.mxu0 0.0
    %248 = vmatpush1.msra.mxu0 0.0
    %249 = vmatprep.subr.mxu0 0.0
    %250 = vmatpush1.msra.mxu0 0.0
    %251 = vmatprep.subr.mxu0 0.0
    %252 = vmatpush1.msra.mxu0 0.0
    %253 = vmatprep.subr.mxu0 0.0
    %254 = vmatpush1.msra.mxu0 0.0
    %255 = vmatprep.subr.mxu0 0.0
    %256 = vmatpush1.msra.mxu0 0.0
    %257 = vmatprep.subr.mxu0 0.0
    %258 = vmatpush1.msra.mxu0 0.0
    %259 = vmatprep.subr.mxu0 0.0
    %260 = vmatpush1.msra.mxu0 0.0
    %261 = vmatprep.subr.mxu0 0.0
    %262 = vmatpush1.msra.mxu0 0.0
    %263 = vmatprep.subr.mxu0 0.0
    %264 = vmatpush1.msra.mxu0 0.0
    %265 = vmatprep.subr.mxu0 0.0
    %266 = vmatpush1.msra.mxu0 0.0
    %267 = vmatprep.subr.mxu0 0.0
    %268 = vmatpush1.msra.mxu0 0.0
    %269 = vmatprep.subr.mxu0 0.0
    %270 = vmatpush1.msra.mxu0 0.0
    %271 = vmatprep.subr.mxu0 0.0
    %272 = vmatpush1.msra.mxu0 0.0
    %273 = vmatprep.subr.mxu0 0.0
    %274 = vmatpush1.msra.mxu0 0.0
    %275 = vmatprep.mubr.f32.mxu0 0.0
    %276 = vmatmul.mubr.f32.gmra.mrb[0].mxu0 %v187
    %v277 = vpop.f32.mrb[0].mxu0
    %v278 = vadd.f32 %v209, %v277
    %v279 = vpop.f32.mrb[0].mxu0
    %280 = vdwg.mxu0
    %vm281 = vcmp.gt.f32.partialorder %v278, 0.0
    %v282 = vmin.f32 %v278, 0.0
    %v283 = vmul.f32 %v282, 1.442695
    %v284 = vpow.pop %v283
    %v285 = vsub.f32 %v284, 1.0
    %v286 = vmul.f32 %v285, 1.6732632
    %v287 = vsel %vm281, %v278, %v286
    %v288 = vld [vmem:[#allocation6] sm:$0xff]
    %v289 = vld [vmem:[#allocation6 + $0x8] sm:$0xff]
    %v290 = vld [vmem:[#allocation6 + $0x10] sm:$0xff]
    %v291 = vld [vmem:[#allocation6 + $0x18] sm:$0xff]
    %v292 = vld [vmem:[#allocation6 + $0x20] sm:$0xff]
    %v293 = vld [vmem:[#allocation6 + $0x28] sm:$0xff]
    %v294 = vld [vmem:[#allocation6 + $0x30] sm:$0xff]
    %v295 = vld [vmem:[#allocation6 + $0x38] sm:$0xff]
    %v296 = vld [vmem:[#allocation6 + $0x40] sm:$0xff]
    %v297 = vld [vmem:[#allocation6 + $0x48] sm:$0xff]
    %v298 = vld [vmem:[#allocation6 + $0x50] sm:$0xff]
    %v299 = vld [vmem:[#allocation6 + $0x58] sm:$0xff]
    %v300 = vld [vmem:[#allocation6 + $0x60] sm:$0xff]
    %v301 = vld [vmem:[#allocation6 + $0x68] sm:$0xff]
    %v302 = vld [vmem:[#allocation6 + $0x70] sm:$0xff]
    %v303 = vld [vmem:[#allocation6 + $0x78] sm:$0xff]
    %v304 = vld [vmem:[%s6] sm:$0x1]
    %v306 = vlaneseq
    %v307 = vshrl.u32 %v306, 7
    %v308 = vsub.s32 0, %v307
    %v309 = vrot.slane %v304, %v308
    %311 = vmatprep.subr.mxu0 0.0
    %312 = vmatpush1.msra.mxu0 %v288
    %313 = vmatprep.subr.mxu0 0.0
    %314 = vmatpush1.msra.mxu0 %v289
    %315 = vmatprep.subr.mxu0 0.0
    %316 = vmatpush1.msra.mxu0 %v290
    %317 = vmatprep.subr.mxu0 0.0
    %318 = vmatpush1.msra.mxu0 %v291
    %319 = vmatprep.subr.mxu0 0.0
    %320 = vmatpush1.msra.mxu0 %v292
    %321 = vmatprep.subr.mxu0 0.0
    %322 = vmatpush1.msra.mxu0 %v293
    %323 = vmatprep.subr.mxu0 0.0
    %324 = vmatpush1.msra.mxu0 %v294
    %325 = vmatprep.subr.mxu0 0.0
    %326 = vmatpush1.msra.mxu0 %v295
    %327 = vmatprep.subr.mxu0 0.0
    %328 = vmatpush1.msra.mxu0 %v296
    %329 = vmatprep.subr.mxu0 0.0
    %330 = vmatpush1.msra.mxu0 %v297
    %331 = vmatprep.subr.mxu0 0.0
    %332 = vmatpush1.msra.mxu0 %v298
    %333 = vmatprep.subr.mxu0 0.0
    %334 = vmatpush1.msra.mxu0 %v299
    %335 = vmatprep.subr.mxu0 0.0
    %336 = vmatpush1.msra.mxu0 %v300
    %337 = vmatprep.subr.mxu0 0.0
    %338 = vmatpush1.msra.mxu0 %v301
    %339 = vmatprep.subr.mxu0 0.0
    %340 = vmatpush1.msra.mxu0 %v302
    %341 = vmatprep.subr.mxu0 0.0
    %342 = vmatpush1.msra.mxu0 %v303
    %343 = vmatprep.subr.mxu0 0.0
    %344 = vmatpush1.msra.mxu0 0.0
    %345 = vmatprep.subr.mxu0 0.0
    %346 = vmatpush1.msra.mxu0 0.0
    %347 = vmatprep.subr.mxu0 0.0
    %348 = vmatpush1.msra.mxu0 0.0
    %349 = vmatprep.subr.mxu0 0.0
    %350 = vmatpush1.msra.mxu0 0.0
    %351 = vmatprep.subr.mxu0 0.0
    %352 = vmatpush1.msra.mxu0 0.0
    %353 = vmatprep.subr.mxu0 0.0
    %354 = vmatpush1.msra.mxu0 0.0
    %355 = vmatprep.subr.mxu0 0.0
    %356 = vmatpush1.msra.mxu0 0.0
    %357 = vmatprep.subr.mxu0 0.0
    %358 = vmatpush1.msra.mxu0 0.0
    %359 = vmatprep.subr.mxu0 0.0
    %360 = vmatpush1.msra.mxu0 0.0
    %361 = vmatprep.subr.mxu0 0.0
    %362 = vmatpush1.msra.mxu0 0.0
    %363 = vmatprep.subr.mxu0 0.0
    %364 = vmatpush1.msra.mxu0 0.0
    %365 = vmatprep.subr.mxu0 0.0
    %366 = vmatpush1.msra.mxu0 0.0
    %367 = vmatprep.subr.mxu0 0.0
    %368 = vmatpush1.msra.mxu0 0.0
    %369 = vmatprep.subr.mxu0 0.0
    %370 = vmatpush1.msra.mxu0 0.0
    %371 = vmatprep.subr.mxu0 0.0
    %372 = vmatpush1.msra.mxu0 0.0
    %373 = vmatprep.subr.mxu0 0.0
    %374 = vmatpush1.msra.mxu0 0.0
    %375 = vmatprep.mubr.f32.mxu0 0.0
    %376 = vmatmul.mubr.f32.gmra.mrb[0].mxu0 %v287
    %v377 = vpop.f32.mrb[0].mxu0
    %v378 = vadd.f32 %v309, %v377
    %v379 = vpop.f32.mrb[0].mxu0
    %380 = vdwg.mxu0
    %vm381 = vcmp.gt.f32.partialorder %v378, 0.0
    %v382 = vmin.f32 %v378, 0.0
    %v383 = vmul.f32 %v382, 1.442695
    %v384 = vpow.pop %v383
    %v385 = vsub.f32 %v384, 1.0
    %v386 = vmul.f32 %v385, 1.6732632
    %v387 = vsel %vm381, %v378, %v386
    %v388 = vld [vmem:[#allocation7] sm:$0xff]
    %v389 = vld [vmem:[#allocation7 + $0x8] sm:$0xff]
    %v390 = vld [vmem:[#allocation7 + $0x10] sm:$0xff]
    %v391 = vld [vmem:[#allocation7 + $0x18] sm:$0xff]
    %v392 = vld [vmem:[#allocation7 + $0x20] sm:$0xff]
    %v393 = vld [vmem:[#allocation7 + $0x28] sm:$0xff]
    %v394 = vld [vmem:[#allocation7 + $0x30] sm:$0xff]
    %v395 = vld [vmem:[#allocation7 + $0x38] sm:$0xff]
    %v396 = vld [vmem:[#allocation7 + $0x40] sm:$0xff]
    %v397 = vld [vmem:[#allocation7 + $0x48] sm:$0xff]
    %v398 = vld [vmem:[#allocation7 + $0x50] sm:$0xff]
    %v399 = vld [vmem:[#allocation7 + $0x58] sm:$0xff]
    %v400 = vld [vmem:[#allocation7 + $0x60] sm:$0xff]
    %v401 = vld [vmem:[#allocation7 + $0x68] sm:$0xff]
    %v402 = vld [vmem:[#allocation7 + $0x70] sm:$0xff]
    %v403 = vld [vmem:[#allocation7 + $0x78] sm:$0xff]
    %v404 = vld [vmem:[%s8] sm:$0x1]
    %v406 = vlaneseq
    %v407 = vshrl.u32 %v406, 7
    %v408 = vsub.s32 0, %v407
    %v409 = vrot.slane %v404, %v408
    %411 = vmatprep.subr.mxu0 0.0
    %412 = vmatpush1.msra.mxu0 %v388
    %413 = vmatprep.subr.mxu0 0.0
    %414 = vmatpush1.msra.mxu0 %v389
    %415 = vmatprep.subr.mxu0 0.0
    %416 = vmatpush1.msra.mxu0 %v390
    %417 = vmatprep.subr.mxu0 0.0
    %418 = vmatpush1.msra.mxu0 %v391
    %419 = vmatprep.subr.mxu0 0.0
    %420 = vmatpush1.msra.mxu0 %v392
    %421 = vmatprep.subr.mxu0 0.0
    %422 = vmatpush1.msra.mxu0 %v393
    %423 = vmatprep.subr.mxu0 0.0
    %424 = vmatpush1.msra.mxu0 %v394
    %425 = vmatprep.subr.mxu0 0.0
    %426 = vmatpush1.msra.mxu0 %v395
    %427 = vmatprep.subr.mxu0 0.0
    %428 = vmatpush1.msra.mxu0 %v396
    %429 = vmatprep.subr.mxu0 0.0
    %430 = vmatpush1.msra.mxu0 %v397
    %431 = vmatprep.subr.mxu0 0.0
    %432 = vmatpush1.msra.mxu0 %v398
    %433 = vmatprep.subr.mxu0 0.0
    %434 = vmatpush1.msra.mxu0 %v399
    %435 = vmatprep.subr.mxu0 0.0
    %436 = vmatpush1.msra.mxu0 %v400
    %437 = vmatprep.subr.mxu0 0.0
    %438 = vmatpush1.msra.mxu0 %v401
    %439 = vmatprep.subr.mxu0 0.0
    %440 = vmatpush1.msra.mxu0 %v402
    %441 = vmatprep.subr.mxu0 0.0
    %442 = vmatpush1.msra.mxu0 %v403
    %443 = vmatprep.subr.mxu0 0.0
    %444 = vmatpush1.msra.mxu0 0.0
    %445 = vmatprep.subr.mxu0 0.0
    %446 = vmatpush1.msra.mxu0 0.0
    %447 = vmatprep.subr.mxu0 0.0
    %448 = vmatpush1.msra.mxu0 0.0
    %449 = vmatprep.subr.mxu0 0.0
    %450 = vmatpush1.msra.mxu0 0.0
    %451 = vmatprep.subr.mxu0 0.0
    %452 = vmatpush1.msra.mxu0 0.0
    %453 = vmatprep.subr.mxu0 0.0
    %454 = vmatpush1.msra.mxu0 0.0
    %455 = vmatprep.subr.mxu0 0.0
    %456 = vmatpush1.msra.mxu0 0.0
    %457 = vmatprep.subr.mxu0 0.0
    %458 = vmatpush1.msra.mxu0 0.0
    %459 = vmatprep.subr.mxu0 0.0
    %460 = vmatpush1.msra.mxu0 0.0
    %461 = vmatprep.subr.mxu0 0.0
    %462 = vmatpush1.msra.mxu0 0.0
    %463 = vmatprep.subr.mxu0 0.0
    %464 = vmatpush1.msra.mxu0 0.0
    %465 = vmatprep.subr.mxu0 0.0
    %466 = vmatpush1.msra.mxu0 0.0
    %467 = vmatprep.subr.mxu0 0.0
    %468 = vmatpush1.msra.mxu0 0.0
    %469 = vmatprep.subr.mxu0 0.0
    %470 = vmatpush1.msra.mxu0 0.0
    %471 = vmatprep.subr.mxu0 0.0
    %472 = vmatpush1.msra.mxu0 0.0
    %473 = vmatprep.subr.mxu0 0.0
    %474 = vmatpush1.msra.mxu0 0.0
    %475 = vmatprep.mubr.f32.mxu0 0.0
    %476 = vmatmul.mubr.f32.gmra.mrb[0].mxu0 %v387
    %v477 = vpop.f32.mrb[0].mxu0
    %v478 = vadd.f32 %v409, %v477
    %v479 = vpop.f32.mrb[0].mxu0
    %480 = vdwg.mxu0
    %v481 = vmul.f32 %v478, %v478
    %482 = vadd.xlane.f32.xlu0 %v481
    %v483 = vpop.xlane.xlu0 %482
    %v484 = vmax.f32 %v483, 1e-24
    %v485 = vrsqrt.pop %v484
    %v486 = vmul.f32 %v478, %v485
    %487 = vst [vmem:[%s9] sm:$0xff] %v486
    // Predicated region
    $region54: #{_lambda_.1} parent=1 // pred_check
      _
    $region55: #{_lambda_.1} parent=1 // pred_check_branch
      %489 = sbr.rel (0) target = $region57
    $region56: #{_lambda_.1} parent=1 // pred_region
      _
    $region57: #{_lambda_.1} parent=1 // pred_fallthru
      _
    // Predicated region
    $region58: #{_lambda_.1} parent=1 // pred_check
      _
    $region59: #{_lambda_.1} parent=1 // pred_check_branch
      %491 = sbr.rel (0) target = $region61
    $region60: #{_lambda_.1} parent=1 // pred_region
      _
    $region61: #{_lambda_.1} parent=1 // pred_fallthru
      _
    %492 = vsyncpa [#allocation3], 1
    %493 = vsyncpa [#allocation5], 1
    %494 = vsyncpa [#allocation8], 1

// kernel: _lambda_.1
$region0: #{_lambda_.1}
  #allocation0 [shape = 'u32[]', space=smem, size = 0x4, offset = 0x4, fixed_abs, tag = 'smem constant byte address 0x4 - core index']
  #allocation1 [shape = 'u32[144,128]{1,0:T(1,128)}', space=vmem, size = 0x12000, scoped, tag = 'internal scratch']
  %s0 = inlined_call_operand.vmem [shape: f32[8,128], index: 0, kind: input, shape index: {}]
  %s1 = inlined_call_operand.hbm [shape: f32[128,128], index: 1, kind: input, shape index: {}]
  %s2 = inlined_call_operand.vmem [shape: f32[1,128], index: 2, kind: input, shape index: {}]
  %s3 = inlined_call_operand.hbm [shape: f32[128,128], index: 3, kind: input, shape index: {}]
  %s4 = inlined_call_operand.vmem [shape: f32[1,128], index: 4, kind: input, shape index: {}]
  %s5 = inlined_call_operand.hbm [shape: f32[128,128], index: 5, kind: input, shape index: {}]
  %s6 = inlined_call_operand.vmem [shape: f32[1,128], index: 6, kind: input, shape index: {}]
  %s7 = inlined_call_operand.hbm [shape: f32[128,128], index: 7, kind: input, shape index: {}]
  %s8 = inlined_call_operand.vmem [shape: f32[1,128], index: 8, kind: input, shape index: {}]
  %s9 = inlined_call_operand.vmem [shape: f32[8,128], index: 9, kind: output, shape index: {}]
  %s10 = sld [smem:[#allocation0]]
  $region62: #{_lambda_.1} parent=0
    _
  %s12 = ssub.s32 1, %s10
  %s13 = scalar_select 0, %s12, %s10
  $region1: #{_lambda_.1} parent=0
    #allocation2 [shape = 'u8[65536]{0}', space=vmem, size = 0x10000, scoped, tag = 'input window, operand 1, single buffered']
    #allocation3 [shape = 's32[1]{0}', space=sflag, size = 0x4, scoped, tag = 'scoped memory for _lambda_.1']
    #allocation4 [shape = 'u8[65536]{0}', space=vmem, size = 0x10000, scoped, tag = 'input window, operand 3, single buffered']
    #allocation5 [shape = 's32[1]{0}', space=sflag, size = 0x4, scoped, tag = 'scoped memory for _lambda_.1']
    #allocation6 [shape = 'u8[65536]{0}', space=vmem, size = 0x10000, scoped, tag = 'input window, operand 5, single buffered']
    #allocation7 [shape = 'u8[65536]{0}', space=vmem, size = 0x10000, scoped, tag = 'input window, operand 7, single buffered']
    #allocation8 [shape = 's32[1]{0}', space=sflag, size = 0x4, scoped, tag = 'scoped memory for _lambda_.1']
    %14 = vsyncpa [#allocation3], 0
    %15 = vsyncpa [#allocation5], 0
    %16 = vsyncpa [#allocation8], 0
    // Predicated region
    $region2: #{_lambda_.1} parent=1 // pred_check
      _
    $region3: #{_lambda_.1} parent=1 // pred_check_branch
      %18 = sbr.rel (0) target = $region5
    $region4: #{_lambda_.1} parent=1 // pred_region
      _
    $region5: #{_lambda_.1} parent=1 // pred_fallthru
      _
    // Predicated region
    $region6: #{_lambda_.1} parent=1 // pred_check
      _
    $region7: #{_lambda_.1} parent=1 // pred_check_branch
      %20 = sbr.rel (0) target = $region9
    $region8: #{_lambda_.1} parent=1 // pred_region
      %s22 = ssub.s32 2048, 2048
      %23 = vsyncadd [#allocation3], %s22
      %s24 = sshll.u32 [#allocation2], 4
      %s25 = int_to_ptr.vmem [resolvable:$true] %s24
      %30 = dma.hbm_to_vmem [thread:$0]  %s1, 2048, %s25, [#allocation3], 128, 128, 8
    $region9: #{_lambda_.1} parent=1 // pred_fallthru
      _
    // Predicated region
    $region10: #{_lambda_.1} parent=1 // pred_check
      _
    $region11: #{_lambda_.1} parent=1 // pred_check_branch
      %32 = sbr.rel (0) target = $region13
    $region12: #{_lambda_.1} parent=1 // pred_region
      _
    $region13: #{_lambda_.1} parent=1 // pred_fallthru
      _
    // Predicated region
    $region14: #{_lambda_.1} parent=1 // pred_check
      _
    $region15: #{_lambda_.1} parent=1 // pred_check_branch
      %34 = sbr.rel (0) target = $region17
    $region16: #{_lambda_.1} parent=1 // pred_region
      %s36 = ssub.s32 2048, 2048
      %37 = vsyncadd [#allocation5], %s36
      %s38 = sshll.u32 [#allocation4], 4
      %s39 = int_to_ptr.vmem [resolvable:$true] %s38
      %44 = dma.hbm_to_vmem [thread:$0]  %s3, 2048, %s39, [#allocation5], 128, 128, 8
    $region17: #{_lambda_.1} parent=1 // pred_fallthru
      _
    // Predicated region
    $region18: #{_lambda_.1} parent=1 // pred_check
      _
    $region19: #{_lambda_.1} parent=1 // pred_check_branch
      %46 = sbr.rel (0) target = $region21
    $region20: #{_lambda_.1} parent=1 // pred_region
      _
    $region21: #{_lambda_.1} parent=1 // pred_fallthru
      _
    // Predicated region
    $region22: #{_lambda_.1} parent=1 // pred_check
      _
    $region23: #{_lambda_.1} parent=1 // pred_check_branch
      %48 = sbr.rel (0) target = $region25
    $region24: #{_lambda_.1} parent=1 // pred_region
      %s50 = ssub.s32 2048, 2048
      %51 = vsyncadd [#allocation5], %s50
      %s52 = sshll.u32 [#allocation6], 4
      %s53 = int_to_ptr.vmem [resolvable:$true] %s52
      %58 = dma.hbm_to_vmem [thread:$0]  %s5, 2048, %s53, [#allocation5], 128, 128, 8
    $region25: #{_lambda_.1} parent=1 // pred_fallthru
      _
    // Predicated region
    $region26: #{_lambda_.1} parent=1 // pred_check
      _
    $region27: #{_lambda_.1} parent=1 // pred_check_branch
      %60 = sbr.rel (0) target = $region29
    $region28: #{_lambda_.1} parent=1 // pred_region
      _
    $region29: #{_lambda_.1} parent=1 // pred_fallthru
      _
    // Predicated region
    $region30: #{_lambda_.1} parent=1 // pred_check
      _
    $region31: #{_lambda_.1} parent=1 // pred_check_branch
      %62 = sbr.rel (0) target = $region33
    $region32: #{_lambda_.1} parent=1 // pred_region
      %s64 = ssub.s32 2048, 2048
      %65 = vsyncadd [#allocation8], %s64
      %s66 = sshll.u32 [#allocation7], 4
      %s67 = int_to_ptr.vmem [resolvable:$true] %s66
      %72 = dma.hbm_to_vmem [thread:$0]  %s7, 2048, %s67, [#allocation8], 128, 128, 8
    $region33: #{_lambda_.1} parent=1 // pred_fallthru
      _
    // Predicated region
    $region34: #{_lambda_.1} parent=1 // pred_check
      _
    $region35: #{_lambda_.1} parent=1 // pred_check_branch
      %74 = sbr.rel (0) target = $region37
    $region36: #{_lambda_.1} parent=1 // pred_region
      _
    $region37: #{_lambda_.1} parent=1 // pred_fallthru
      _
    // Predicated region
    $region38: #{_lambda_.1} parent=1 // pred_check
      _
    $region39: #{_lambda_.1} parent=1 // pred_check_branch
      %76 = sbr.rel (0) target = $region41
    $region40: #{_lambda_.1} parent=1 // pred_region
      %77 = dma.done [#allocation3], 2048
    $region41: #{_lambda_.1} parent=1 // pred_fallthru
      _
    // Predicated region
    $region42: #{_lambda_.1} parent=1 // pred_check
      _
    $region43: #{_lambda_.1} parent=1 // pred_check_branch
      %79 = sbr.rel (0) target = $region45
    $region44: #{_lambda_.1} parent=1 // pred_region
      %80 = dma.done [#allocation5], 2048
    $region45: #{_lambda_.1} parent=1 // pred_fallthru
      _
    // Predicated region
    $region46: #{_lambda_.1} parent=1 // pred_check
      _
    $region47: #{_lambda_.1} parent=1 // pred_check_branch
      %82 = sbr.rel (0) target = $region49
    $region48: #{_lambda_.1} parent=1 // pred_region
      %83 = dma.done [#allocation5], 2048
    $region49: #{_lambda_.1} parent=1 // pred_fallthru
      _
    // Predicated region
    $region50: #{_lambda_.1} parent=1 // pred_check
      _
    $region51: #{_lambda_.1} parent=1 // pred_check_branch
      %85 = sbr.rel (0) target = $region53
    $region52: #{_lambda_.1} parent=1 // pred_region
      %86 = dma.done [#allocation8], 2048
    $region53: #{_lambda_.1} parent=1 // pred_fallthru
      _
    %v87 = vld [vmem:[%s0] sm:$0xff]
    %v88 = vld [vmem:[#allocation2] sm:$0xff]
    %v89 = vld [vmem:[#allocation2 + $0x8] sm:$0xff]
    %v90 = vld [vmem:[#allocation2 + $0x10] sm:$0xff]
    %v91 = vld [vmem:[#allocation2 + $0x18] sm:$0xff]
    %v92 = vld [vmem:[#allocation2 + $0x20] sm:$0xff]
    %v93 = vld [vmem:[#allocation2 + $0x28] sm:$0xff]
    %v94 = vld [vmem:[#allocation2 + $0x30] sm:$0xff]
    %v95 = vld [vmem:[#allocation2 + $0x38] sm:$0xff]
    %v96 = vld [vmem:[#allocation2 + $0x40] sm:$0xff]
    %v97 = vld [vmem:[#allocation2 + $0x48] sm:$0xff]
    %v98 = vld [vmem:[#allocation2 + $0x50] sm:$0xff]
    %v99 = vld [vmem:[#allocation2 + $0x58] sm:$0xff]
    %v100 = vld [vmem:[#allocation2 + $0x60] sm:$0xff]
    %v101 = vld [vmem:[#allocation2 + $0x68] sm:$0xff]
    %v102 = vld [vmem:[#allocation2 + $0x70] sm:$0xff]
    %v103 = vld [vmem:[#allocation2 + $0x78] sm:$0xff]
    %v104 = vld [vmem:[%s2] sm:$0x1]
    %v106 = vlaneseq
    %v107 = vshrl.u32 %v106, 7
    %v108 = vsub.s32 0, %v107
    %v109 = vrot.slane %v104, %v108
    %111 = vmatprep.subr.mxu0 0.0
    %112 = vmatpush1.msra.mxu0 %v88
    %113 = vmatprep.subr.mxu0 0.0
    %114 = vmatpush1.msra.mxu0 %v89
    %115 = vmatprep.subr.mxu0 0.0
    %116 = vmatpush1.msra.mxu0 %v90
    %117 = vmatprep.subr.mxu0 0.0
    %118 = vmatpush1.msra.mxu0 %v91
    %119 = vmatprep.subr.mxu0 0.0
    %120 = vmatpush1.msra.mxu0 %v92
    %121 = vmatprep.subr.mxu0 0.0
    %122 = vmatpush1.msra.mxu0 %v93
    %123 = vmatprep.subr.mxu0 0.0
    %124 = vmatpush1.msra.mxu0 %v94
    %125 = vmatprep.subr.mxu0 0.0
    %126 = vmatpush1.msra.mxu0 %v95
    %127 = vmatprep.subr.mxu0 0.0
    %128 = vmatpush1.msra.mxu0 %v96
    %129 = vmatprep.subr.mxu0 0.0
    %130 = vmatpush1.msra.mxu0 %v97
    %131 = vmatprep.subr.mxu0 0.0
    %132 = vmatpush1.msra.mxu0 %v98
    %133 = vmatprep.subr.mxu0 0.0
    %134 = vmatpush1.msra.mxu0 %v99
    %135 = vmatprep.subr.mxu0 0.0
    %136 = vmatpush1.msra.mxu0 %v100
    %137 = vmatprep.subr.mxu0 0.0
    %138 = vmatpush1.msra.mxu0 %v101
    %139 = vmatprep.subr.mxu0 0.0
    %140 = vmatpush1.msra.mxu0 %v102
    %141 = vmatprep.subr.mxu0 0.0
    %142 = vmatpush1.msra.mxu0 %v103
    %143 = vmatprep.subr.mxu0 0.0
    %144 = vmatpush1.msra.mxu0 0.0
    %145 = vmatprep.subr.mxu0 0.0
    %146 = vmatpush1.msra.mxu0 0.0
    %147 = vmatprep.subr.mxu0 0.0
    %148 = vmatpush1.msra.mxu0 0.0
    %149 = vmatprep.subr.mxu0 0.0
    %150 = vmatpush1.msra.mxu0 0.0
    %151 = vmatprep.subr.mxu0 0.0
    %152 = vmatpush1.msra.mxu0 0.0
    %153 = vmatprep.subr.mxu0 0.0
    %154 = vmatpush1.msra.mxu0 0.0
    %155 = vmatprep.subr.mxu0 0.0
    %156 = vmatpush1.msra.mxu0 0.0
    %157 = vmatprep.subr.mxu0 0.0
    %158 = vmatpush1.msra.mxu0 0.0
    %159 = vmatprep.subr.mxu0 0.0
    %160 = vmatpush1.msra.mxu0 0.0
    %161 = vmatprep.subr.mxu0 0.0
    %162 = vmatpush1.msra.mxu0 0.0
    %163 = vmatprep.subr.mxu0 0.0
    %164 = vmatpush1.msra.mxu0 0.0
    %165 = vmatprep.subr.mxu0 0.0
    %166 = vmatpush1.msra.mxu0 0.0
    %167 = vmatprep.subr.mxu0 0.0
    %168 = vmatpush1.msra.mxu0 0.0
    %169 = vmatprep.subr.mxu0 0.0
    %170 = vmatpush1.msra.mxu0 0.0
    %171 = vmatprep.subr.mxu0 0.0
    %172 = vmatpush1.msra.mxu0 0.0
    %173 = vmatprep.subr.mxu0 0.0
    %174 = vmatpush1.msra.mxu0 0.0
    %175 = vmatprep.mubr.f32.mxu0 0.0
    %176 = vmatmul.mubr.f32.gmra.mrb[0].mxu0 %v87
    %v177 = vpop.f32.mrb[0].mxu0
    %v178 = vadd.f32 %v109, %v177
    %v179 = vpop.f32.mrb[0].mxu0
    %180 = vdwg.mxu0
    %vm181 = vcmp.gt.f32.partialorder %v178, 0.0
    %v182 = vmin.f32 %v178, 0.0
    %v183 = vmul.f32 %v182, 1.442695
    %v184 = vpow.pop %v183
    %v185 = vsub.f32 %v184, 1.0
    %v186 = vmul.f32 %v185, 1.6732632
    %v187 = vsel %vm181, %v178, %v186
    %v188 = vld [vmem:[#allocation4] sm:$0xff]
    %v189 = vld [vmem:[#allocation4 + $0x8] sm:$0xff]
    %v190 = vld [vmem:[#allocation4 + $0x10] sm:$0xff]
    %v191 = vld [vmem:[#allocation4 + $0x18] sm:$0xff]
    %v192 = vld [vmem:[#allocation4 + $0x20] sm:$0xff]
    %v193 = vld [vmem:[#allocation4 + $0x28] sm:$0xff]
    %v194 = vld [vmem:[#allocation4 + $0x30] sm:$0xff]
    %v195 = vld [vmem:[#allocation4 + $0x38] sm:$0xff]
    %v196 = vld [vmem:[#allocation4 + $0x40] sm:$0xff]
    %v197 = vld [vmem:[#allocation4 + $0x48] sm:$0xff]
    %v198 = vld [vmem:[#allocation4 + $0x50] sm:$0xff]
    %v199 = vld [vmem:[#allocation4 + $0x58] sm:$0xff]
    %v200 = vld [vmem:[#allocation4 + $0x60] sm:$0xff]
    %v201 = vld [vmem:[#allocation4 + $0x68] sm:$0xff]
    %v202 = vld [vmem:[#allocation4 + $0x70] sm:$0xff]
    %v203 = vld [vmem:[#allocation4 + $0x78] sm:$0xff]
    %v204 = vld [vmem:[%s4] sm:$0x1]
    %v206 = vlaneseq
    %v207 = vshrl.u32 %v206, 7
    %v208 = vsub.s32 0, %v207
    %v209 = vrot.slane %v204, %v208
    %211 = vmatprep.subr.mxu0 0.0
    %212 = vmatpush1.msra.mxu0 %v188
    %213 = vmatprep.subr.mxu0 0.0
    %214 = vmatpush1.msra.mxu0 %v189
    %215 = vmatprep.subr.mxu0 0.0
    %216 = vmatpush1.msra.mxu0 %v190
    %217 = vmatprep.subr.mxu0 0.0
    %218 = vmatpush1.msra.mxu0 %v191
    %219 = vmatprep.subr.mxu0 0.0
    %220 = vmatpush1.msra.mxu0 %v192
    %221 = vmatprep.subr.mxu0 0.0
    %222 = vmatpush1.msra.mxu0 %v193
    %223 = vmatprep.subr.mxu0 0.0
    %224 = vmatpush1.msra.mxu0 %v194
    %225 = vmatprep.subr.mxu0 0.0
    %226 = vmatpush1.msra.mxu0 %v195
    %227 = vmatprep.subr.mxu0 0.0
    %228 = vmatpush1.msra.mxu0 %v196
    %229 = vmatprep.subr.mxu0 0.0
    %230 = vmatpush1.msra.mxu0 %v197
    %231 = vmatprep.subr.mxu0 0.0
    %232 = vmatpush1.msra.mxu0 %v198
    %233 = vmatprep.subr.mxu0 0.0
    %234 = vmatpush1.msra.mxu0 %v199
    %235 = vmatprep.subr.mxu0 0.0
    %236 = vmatpush1.msra.mxu0 %v200
    %237 = vmatprep.subr.mxu0 0.0
    %238 = vmatpush1.msra.mxu0 %v201
    %239 = vmatprep.subr.mxu0 0.0
    %240 = vmatpush1.msra.mxu0 %v202
    %241 = vmatprep.subr.mxu0 0.0
    %242 = vmatpush1.msra.mxu0 %v203
    %243 = vmatprep.subr.mxu0 0.0
    %244 = vmatpush1.msra.mxu0 0.0
    %245 = vmatprep.subr.mxu0 0.0
    %246 = vmatpush1.msra.mxu0 0.0
    %247 = vmatprep.subr.mxu0 0.0
    %248 = vmatpush1.msra.mxu0 0.0
    %249 = vmatprep.subr.mxu0 0.0
    %250 = vmatpush1.msra.mxu0 0.0
    %251 = vmatprep.subr.mxu0 0.0
    %252 = vmatpush1.msra.mxu0 0.0
    %253 = vmatprep.subr.mxu0 0.0
    %254 = vmatpush1.msra.mxu0 0.0
    %255 = vmatprep.subr.mxu0 0.0
    %256 = vmatpush1.msra.mxu0 0.0
    %257 = vmatprep.subr.mxu0 0.0
    %258 = vmatpush1.msra.mxu0 0.0
    %259 = vmatprep.subr.mxu0 0.0
    %260 = vmatpush1.msra.mxu0 0.0
    %261 = vmatprep.subr.mxu0 0.0
    %262 = vmatpush1.msra.mxu0 0.0
    %263 = vmatprep.subr.mxu0 0.0
    %264 = vmatpush1.msra.mxu0 0.0
    %265 = vmatprep.subr.mxu0 0.0
    %266 = vmatpush1.msra.mxu0 0.0
    %267 = vmatprep.subr.mxu0 0.0
    %268 = vmatpush1.msra.mxu0 0.0
    %269 = vmatprep.subr.mxu0 0.0
    %270 = vmatpush1.msra.mxu0 0.0
    %271 = vmatprep.subr.mxu0 0.0
    %272 = vmatpush1.msra.mxu0 0.0
    %273 = vmatprep.subr.mxu0 0.0
    %274 = vmatpush1.msra.mxu0 0.0
    %275 = vmatprep.mubr.f32.mxu0 0.0
    %276 = vmatmul.mubr.f32.gmra.mrb[0].mxu0 %v187
    %v277 = vpop.f32.mrb[0].mxu0
    %v278 = vadd.f32 %v209, %v277
    %v279 = vpop.f32.mrb[0].mxu0
    %280 = vdwg.mxu0
    %vm281 = vcmp.gt.f32.partialorder %v278, 0.0
    %v282 = vmin.f32 %v278, 0.0
    %v283 = vmul.f32 %v282, 1.442695
    %v284 = vpow.pop %v283
    %v285 = vsub.f32 %v284, 1.0
    %v286 = vmul.f32 %v285, 1.6732632
    %v287 = vsel %vm281, %v278, %v286
    %v288 = vld [vmem:[#allocation6] sm:$0xff]
    %v289 = vld [vmem:[#allocation6 + $0x8] sm:$0xff]
    %v290 = vld [vmem:[#allocation6 + $0x10] sm:$0xff]
    %v291 = vld [vmem:[#allocation6 + $0x18] sm:$0xff]
    %v292 = vld [vmem:[#allocation6 + $0x20] sm:$0xff]
    %v293 = vld [vmem:[#allocation6 + $0x28] sm:$0xff]
    %v294 = vld [vmem:[#allocation6 + $0x30] sm:$0xff]
    %v295 = vld [vmem:[#allocation6 + $0x38] sm:$0xff]
    %v296 = vld [vmem:[#allocation6 + $0x40] sm:$0xff]
    %v297 = vld [vmem:[#allocation6 + $0x48] sm:$0xff]
    %v298 = vld [vmem:[#allocation6 + $0x50] sm:$0xff]
    %v299 = vld [vmem:[#allocation6 + $0x58] sm:$0xff]
    %v300 = vld [vmem:[#allocation6 + $0x60] sm:$0xff]
    %v301 = vld [vmem:[#allocation6 + $0x68] sm:$0xff]
    %v302 = vld [vmem:[#allocation6 + $0x70] sm:$0xff]
    %v303 = vld [vmem:[#allocation6 + $0x78] sm:$0xff]
    %v304 = vld [vmem:[%s6] sm:$0x1]
    %v306 = vlaneseq
    %v307 = vshrl.u32 %v306, 7
    %v308 = vsub.s32 0, %v307
    %v309 = vrot.slane %v304, %v308
    %311 = vmatprep.subr.mxu0 0.0
    %312 = vmatpush1.msra.mxu0 %v288
    %313 = vmatprep.subr.mxu0 0.0
    %314 = vmatpush1.msra.mxu0 %v289
    %315 = vmatprep.subr.mxu0 0.0
    %316 = vmatpush1.msra.mxu0 %v290
    %317 = vmatprep.subr.mxu0 0.0
    %318 = vmatpush1.msra.mxu0 %v291
    %319 = vmatprep.subr.mxu0 0.0
    %320 = vmatpush1.msra.mxu0 %v292
    %321 = vmatprep.subr.mxu0 0.0
    %322 = vmatpush1.msra.mxu0 %v293
    %323 = vmatprep.subr.mxu0 0.0
    %324 = vmatpush1.msra.mxu0 %v294
    %325 = vmatprep.subr.mxu0 0.0
    %326 = vmatpush1.msra.mxu0 %v295
    %327 = vmatprep.subr.mxu0 0.0
    %328 = vmatpush1.msra.mxu0 %v296
    %329 = vmatprep.subr.mxu0 0.0
    %330 = vmatpush1.msra.mxu0 %v297
    %331 = vmatprep.subr.mxu0 0.0
    %332 = vmatpush1.msra.mxu0 %v298
    %333 = vmatprep.subr.mxu0 0.0
    %334 = vmatpush1.msra.mxu0 %v299
    %335 = vmatprep.subr.mxu0 0.0
    %336 = vmatpush1.msra.mxu0 %v300
    %337 = vmatprep.subr.mxu0 0.0
    %338 = vmatpush1.msra.mxu0 %v301
    %339 = vmatprep.subr.mxu0 0.0
    %340 = vmatpush1.msra.mxu0 %v302
    %341 = vmatprep.subr.mxu0 0.0
    %342 = vmatpush1.msra.mxu0 %v303
    %343 = vmatprep.subr.mxu0 0.0
    %344 = vmatpush1.msra.mxu0 0.0
    %345 = vmatprep.subr.mxu0 0.0
    %346 = vmatpush1.msra.mxu0 0.0
    %347 = vmatprep.subr.mxu0 0.0
    %348 = vmatpush1.msra.mxu0 0.0
    %349 = vmatprep.subr.mxu0 0.0
    %350 = vmatpush1.msra.mxu0 0.0
    %351 = vmatprep.subr.mxu0 0.0
    %352 = vmatpush1.msra.mxu0 0.0
    %353 = vmatprep.subr.mxu0 0.0
    %354 = vmatpush1.msra.mxu0 0.0
    %355 = vmatprep.subr.mxu0 0.0
    %356 = vmatpush1.msra.mxu0 0.0
    %357 = vmatprep.subr.mxu0 0.0
    %358 = vmatpush1.msra.mxu0 0.0
    %359 = vmatprep.subr.mxu0 0.0
    %360 = vmatpush1.msra.mxu0 0.0
    %361 = vmatprep.subr.mxu0 0.0
    %362 = vmatpush1.msra.mxu0 0.0
    %363 = vmatprep.subr.mxu0 0.0
    %364 = vmatpush1.msra.mxu0 0.0
    %365 = vmatprep.subr.mxu0 0.0
    %366 = vmatpush1.msra.mxu0 0.0
    %367 = vmatprep.subr.mxu0 0.0
    %368 = vmatpush1.msra.mxu0 0.0
    %369 = vmatprep.subr.mxu0 0.0
    %370 = vmatpush1.msra.mxu0 0.0
    %371 = vmatprep.subr.mxu0 0.0
    %372 = vmatpush1.msra.mxu0 0.0
    %373 = vmatprep.subr.mxu0 0.0
    %374 = vmatpush1.msra.mxu0 0.0
    %375 = vmatprep.mubr.f32.mxu0 0.0
    %376 = vmatmul.mubr.f32.gmra.mrb[0].mxu0 %v287
    %v377 = vpop.f32.mrb[0].mxu0
    %v378 = vadd.f32 %v309, %v377
    %v379 = vpop.f32.mrb[0].mxu0
    %380 = vdwg.mxu0
    %vm381 = vcmp.gt.f32.partialorder %v378, 0.0
    %v382 = vmin.f32 %v378, 0.0
    %v383 = vmul.f32 %v382, 1.442695
    %v384 = vpow.pop %v383
    %v385 = vsub.f32 %v384, 1.0
    %v386 = vmul.f32 %v385, 1.6732632
    %v387 = vsel %vm381, %v378, %v386
    %v388 = vld [vmem:[#allocation7] sm:$0xff]
    %v389 = vld [vmem:[#allocation7 + $0x8] sm:$0xff]
    %v390 = vld [vmem:[#allocation7 + $0x10] sm:$0xff]
    %v391 = vld [vmem:[#allocation7 + $0x18] sm:$0xff]
    %v392 = vld [vmem:[#allocation7 + $0x20] sm:$0xff]
    %v393 = vld [vmem:[#allocation7 + $0x28] sm:$0xff]
    %v394 = vld [vmem:[#allocation7 + $0x30] sm:$0xff]
    %v395 = vld [vmem:[#allocation7 + $0x38] sm:$0xff]
    %v396 = vld [vmem:[#allocation7 + $0x40] sm:$0xff]
    %v397 = vld [vmem:[#allocation7 + $0x48] sm:$0xff]
    %v398 = vld [vmem:[#allocation7 + $0x50] sm:$0xff]
    %v399 = vld [vmem:[#allocation7 + $0x58] sm:$0xff]
    %v400 = vld [vmem:[#allocation7 + $0x60] sm:$0xff]
    %v401 = vld [vmem:[#allocation7 + $0x68] sm:$0xff]
    %v402 = vld [vmem:[#allocation7 + $0x70] sm:$0xff]
    %v403 = vld [vmem:[#allocation7 + $0x78] sm:$0xff]
    %v404 = vld [vmem:[%s8] sm:$0x1]
    %v406 = vlaneseq
    %v407 = vshrl.u32 %v406, 7
    %v408 = vsub.s32 0, %v407
    %v409 = vrot.slane %v404, %v408
    %411 = vmatprep.subr.mxu0 0.0
    %412 = vmatpush1.msra.mxu0 %v388
    %413 = vmatprep.subr.mxu0 0.0
    %414 = vmatpush1.msra.mxu0 %v389
    %415 = vmatprep.subr.mxu0 0.0
    %416 = vmatpush1.msra.mxu0 %v390
    %417 = vmatprep.subr.mxu0 0.0
    %418 = vmatpush1.msra.mxu0 %v391
    %419 = vmatprep.subr.mxu0 0.0
    %420 = vmatpush1.msra.mxu0 %v392
    %421 = vmatprep.subr.mxu0 0.0
    %422 = vmatpush1.msra.mxu0 %v393
    %423 = vmatprep.subr.mxu0 0.0
    %424 = vmatpush1.msra.mxu0 %v394
    %425 = vmatprep.subr.mxu0 0.0
    %426 = vmatpush1.msra.mxu0 %v395
    %427 = vmatprep.subr.mxu0 0.0
    %428 = vmatpush1.msra.mxu0 %v396
    %429 = vmatprep.subr.mxu0 0.0
    %430 = vmatpush1.msra.mxu0 %v397
    %431 = vmatprep.subr.mxu0 0.0
    %432 = vmatpush1.msra.mxu0 %v398
    %433 = vmatprep.subr.mxu0 0.0
    %434 = vmatpush1.msra.mxu0 %v399
    %435 = vmatprep.subr.mxu0 0.0
    %436 = vmatpush1.msra.mxu0 %v400
    %437 = vmatprep.subr.mxu0 0.0
    %438 = vmatpush1.msra.mxu0 %v401
    %439 = vmatprep.subr.mxu0 0.0
    %440 = vmatpush1.msra.mxu0 %v402
    %441 = vmatprep.subr.mxu0 0.0
    %442 = vmatpush1.msra.mxu0 %v403
    %443 = vmatprep.subr.mxu0 0.0
    %444 = vmatpush1.msra.mxu0 0.0
    %445 = vmatprep.subr.mxu0 0.0
    %446 = vmatpush1.msra.mxu0 0.0
    %447 = vmatprep.subr.mxu0 0.0
    %448 = vmatpush1.msra.mxu0 0.0
    %449 = vmatprep.subr.mxu0 0.0
    %450 = vmatpush1.msra.mxu0 0.0
    %451 = vmatprep.subr.mxu0 0.0
    %452 = vmatpush1.msra.mxu0 0.0
    %453 = vmatprep.subr.mxu0 0.0
    %454 = vmatpush1.msra.mxu0 0.0
    %455 = vmatprep.subr.mxu0 0.0
    %456 = vmatpush1.msra.mxu0 0.0
    %457 = vmatprep.subr.mxu0 0.0
    %458 = vmatpush1.msra.mxu0 0.0
    %459 = vmatprep.subr.mxu0 0.0
    %460 = vmatpush1.msra.mxu0 0.0
    %461 = vmatprep.subr.mxu0 0.0
    %462 = vmatpush1.msra.mxu0 0.0
    %463 = vmatprep.subr.mxu0 0.0
    %464 = vmatpush1.msra.mxu0 0.0
    %465 = vmatprep.subr.mxu0 0.0
    %466 = vmatpush1.msra.mxu0 0.0
    %467 = vmatprep.subr.mxu0 0.0
    %468 = vmatpush1.msra.mxu0 0.0
    %469 = vmatprep.subr.mxu0 0.0
    %470 = vmatpush1.msra.mxu0 0.0
    %471 = vmatprep.subr.mxu0 0.0
    %472 = vmatpush1.msra.mxu0 0.0
    %473 = vmatprep.subr.mxu0 0.0
    %474 = vmatpush1.msra.mxu0 0.0
    %475 = vmatprep.mubr.f32.mxu0 0.0
    %476 = vmatmul.mubr.f32.gmra.mrb[0].mxu0 %v387
    %v477 = vpop.f32.mrb[0].mxu0
    %v478 = vadd.f32 %v409, %v477
    %v479 = vpop.f32.mrb[0].mxu0
    %480 = vdwg.mxu0
    %v481 = vmul.f32 %v478, %v478
    %482 = vadd.xlane.f32.xlu0 %v481
    %v483 = vpop.xlane.xlu0 %482
    %v484 = vmax.f32 %v483, 1e-24
    %v485 = vrsqrt.pop %v484
    %v486 = vmul.f32 %v478, %v485
    %487 = vst [vmem:[%s9] sm:$0xff] %v486
    // Predicated region
    $region54: #{_lambda_.1} parent=1 // pred_check
      _
    $region55: #{_lambda_.1} parent=1 // pred_check_branch
      %489 = sbr.rel (0) target = $region57
    $region56: #{_lambda_.1} parent=1 // pred_region
      _
    $region57: #{_lambda_.1} parent=1 // pred_fallthru
      _
    // Predicated region
    $region58: #{_lambda_.1} parent=1 // pred_check
      _
    $region59: #{_lambda_.1} parent=1 // pred_check_branch
      %491 = sbr.rel (0) target = $region61
    $region60: #{_lambda_.1} parent=1 // pred_region
      _
    $region61: #{_lambda_.1} parent=1 // pred_fallthru
      _
    %492 = vsyncpa [#allocation3], 1
    %493 = vsyncpa [#allocation5], 1
    %494 = vsyncpa [#allocation8], 1

</llo_original>
